<compile_context>
chip_gen: v5e
topology: v5e:2x2
jax: 0.10.0
libtpu: 0.0.40
codegen_flags: <defaults>
</compile_context>

<pallas_src>
import functools

import jax
import jax.numpy as jnp
from jax.experimental import pallas as pl
from jax.experimental.pallas import tpu as pltpu


def _round_up(x, m):
    return (x + m - 1) // m * m


def _pad2(a, rows, cols):
    return jnp.pad(a, ((0, rows - a.shape[0]), (0, cols - a.shape[1])))


# -----------------------------------------------------------------------------
# Fused ADGN forward kernel
# -----------------------------------------------------------------------------
def _adgn_stack_kernel(
    x_in_ref,      # [Np, INp]   f32   raw node features (whole array, resident)
    emb_w_ref,     # [INp, Hp]   f32   emb Linear weight (bias-free)
    a_ref,         # [tm, tk]    bf16  tile of normalized adjacency
    wlin_ref,      # [1, Hp, Hp] f32   per-layer self.linear weight
    wanti_ref,     # [1, Hp, Hp] f32   per-layer  W - W.T - gamma*I
    bias_ref,      # [1, 1, Hp]  f32   per-layer bias
    out_w_ref,     # [Hp, OUTp]  f32   output Linear weight
    out_b_ref,     # [1, OUTp]   f32   output Linear bias
    emb_ref,       # [tm, Hp]    f32   out: x after last conv layer
    out_ref,       # [tm, OUTp]  f32   out: final Linear
    x_vmem,        # [Np, Hp]    f32   resident node state across layers
    t_vmem,        # [Np, Hp]    bf16  resident t = x @ W_lin for current layer
    acc_ref,       # [tm, Hp]    f32   aggr accumulator over A column tiles
    *, epsilon, tm, tk,
):
    l = pl.program_id(0)
    i = pl.program_id(1)
    k = pl.program_id(2)
    n_layers = pl.num_programs(0)
    n_k = pl.num_programs(2)

    # ---- very first grid step: x <- emb(x_in)  (Linear, no bias) ------------
    @pl.when((l == 0) & (i == 0) & (k == 0))
    def _():
        x_vmem[...] = jnp.dot(x_in_ref[...], emb_w_ref[...],
                              preferred_element_type=jnp.float32)

    # ---- start of every conv layer: t <- x @ W_lin (computed once, bf16) ----
    @pl.when((i == 0) & (k == 0))
    def _():
        t = jnp.dot(x_vmem[...], wlin_ref[0],
                    preferred_element_type=jnp.float32)
        t_vmem[...] = t.astype(jnp.bfloat16)

    # ---- aggr accumulation over column tiles of A ----------------------------
    @pl.when(k == 0)
    def _():
        acc_ref[...] = jnp.zeros_like(acc_ref)

    col0 = pl.multiple_of(k * tk, tk)
    acc_ref[...] += jnp.dot(a_ref[...], t_vmem[pl.ds(col0, tk), :],
                            preferred_element_type=jnp.float32)

    # ---- per-row-tile layer epilogue (f32 on VPU/EUP) ------------------------
    @pl.when(k == n_k - 1)
    def _():
        row0 = pl.multiple_of(i * tm, tm)
        x_i = x_vmem[pl.ds(row0, tm), :]
        z = (jnp.dot(x_i, wanti_ref[0], preferred_element_type=jnp.float32)
             + acc_ref[...] + bias_ref[0])
        x_new = x_i + epsilon * jnp.tanh(z)
        x_vmem[pl.ds(row0, tm), :] = x_new

        # Fused output head on the last conv layer.
        @pl.when(l == n_layers - 1)
        def _():
            emb_ref[...] = x_new
            out_ref[...] = (jnp.dot(x_new, out_w_ref[...],
                                    preferred_element_type=jnp.float32)
                            + out_b_ref[...])


def _adgn_stack_call(x_p, emb_w, a_bf16, wlin_stack, wanti_stack, bias_stack,
                     out_w, out_b, *, epsilon, tm, tk):
    L, Hp, _ = wlin_stack.shape
    Np, INp = x_p.shape
    OUTp = out_w.shape[1]
    grid = (L, Np // tm, Np // tk)

    kern = functools.partial(_adgn_stack_kernel,
                             epsilon=float(epsilon), tm=tm, tk=tk)

    last_l = L - 1

    # Output block index only advances on the last layer -> each output block
    # is DMA'd back to HBM exactly once (no redundant per-layer writebacks).
    def out_idx(l, i, k):
        return (jnp.where(l == last_l, i, 0), 0)

    return pl.pallas_call(
        kern,
        out_shape=(jax.ShapeDtypeStruct((Np, Hp), jnp.float32),
                   jax.ShapeDtypeStruct((Np, OUTp), jnp.float32)),
        grid_spec=pltpu.PrefetchScalarGridSpec(
            num_scalar_prefetch=0,
            grid=grid,
            in_specs=[
                pl.BlockSpec((Np, INp), lambda l, i, k: (0, 0)),       # x_in
                pl.BlockSpec((INp, Hp), lambda l, i, k: (0, 0)),       # emb_w
                pl.BlockSpec((tm, tk), lambda l, i, k: (i, k)),        # A tile
                pl.BlockSpec((1, Hp, Hp), lambda l, i, k: (l, 0, 0)),  # W_lin[l]
                pl.BlockSpec((1, Hp, Hp), lambda l, i, k: (l, 0, 0)),  # W_anti[l]
                pl.BlockSpec((1, 1, Hp), lambda l, i, k: (l, 0, 0)),   # bias[l]
                pl.BlockSpec((Hp, OUTp), lambda l, i, k: (0, 0)),      # out_w
                pl.BlockSpec((1, OUTp), lambda l, i, k: (0, 0)),       # out_b
            ],
            out_specs=[
                pl.BlockSpec((tm, Hp), out_idx),                       # emb
                pl.BlockSpec((tm, OUTp), out_idx),                     # out
            ],
            scratch_shapes=[
                pltpu.VMEM((Np, Hp), jnp.float32),    # resident x
                pltpu.VMEM((Np, Hp), jnp.bfloat16),   # resident t = x @ W_lin
                pltpu.VMEM((tm, Hp), jnp.float32),    # aggr accumulator
            ],
        ),
        compiler_params=pltpu.CompilerParams(
            # x (and t) carried in scratch across layers/rows -> all axes
            # must stay sequential ("arbitrary"); sized for v7x's 64 MiB VMEM.
            dimension_semantics=("arbitrary", "arbitrary", "arbitrary"),
            vmem_limit_bytes=48 * 1024 * 1024,
        ),
    )(x_p, emb_w, a_bf16, wlin_stack, wanti_stack, bias_stack, out_w, out_b)


# -----------------------------------------------------------------------------
# Graph -> dense normalized adjacency (GCN norm with self loops), plain JAX.
# -----------------------------------------------------------------------------
def build_norm_adj(edge_index, num_nodes):
    row, col = edge_index[0], edge_index[1]            # source, target
    loop = jnp.arange(num_nodes, dtype=edge_index.dtype)
    row = jnp.concatenate([row, loop])                 # add_self_loops
    col = jnp.concatenate([col, loop])
    deg = jnp.zeros((num_nodes,), jnp.float32).at[row].add(1.0)
    deg_inv_sqrt = jnp.where(deg > 0, jax.lax.rsqrt(deg), 0.0)
    norm = deg_inv_sqrt[row] * deg_inv_sqrt[col]
    # message: norm * x_j (source features), aggregated at target (col)
    A = jnp.zeros((num_nodes, num_nodes), jnp.float32).at[col, row].add(norm)
    return A


# -----------------------------------------------------------------------------
# ADGN model (wrapper around the fused kernel)
# -----------------------------------------------------------------------------
def init_params(key, in_channels, hidden_dim, out_channels, num_layers):
    """Deterministic synthetic init (shapes match the PyTorch module)."""
    keys = jax.random.split(key, 4 + 3 * max(num_layers - 1, 0))
    params = {
        "emb_w": jax.random.normal(keys[0], (in_channels, hidden_dim), jnp.float32)
        * (1.0 / jnp.sqrt(in_channels)),
        "convs": [],
        "out_w": jax.random.normal(keys[1], (hidden_dim, out_channels), jnp.float32)
        * (1.0 / jnp.sqrt(hidden_dim)),
        "out_b": jax.random.normal(keys[2], (1, out_channels), jnp.float32) * 0.01,
    }
    k = 3
    for _ in range(num_layers - 1):
        conv = {
            "Weights": jax.random.normal(keys[k], (hidden_dim, hidden_dim), jnp.float32)
            * (1.0 / jnp.sqrt(hidden_dim)),
            "bias": jax.random.normal(keys[k + 1], (1, hidden_dim), jnp.float32) * 0.01,
            "lin_w": jax.random.normal(keys[k + 2], (hidden_dim, hidden_dim), jnp.float32)
            * (1.0 / jnp.sqrt(hidden_dim)),
        }
        params["convs"].append(conv)
        k += 3
    return params


def _choose_tiles(Np, max_resident_a_bytes):
    """Pick A tiling: keep A fully VMEM-resident across layers when it fits."""
    if Np * Np * 2 <= max_resident_a_bytes:          # bf16 A, whole array
        return Np, Np
    tm = 256
    tk = 512 if (Np % 512 == 0 and Np >= 1024) else 256
    return tm, tk


def adgn_forward(params, x, edge_index, epsilon=0.1, gamma=0.1,
                 antisymmetric=True, max_resident_a_bytes=8 * 1024 * 1024):
    N, Fin = x.shape
    H = params["emb_w"].shape[1]
    OUT = params["out_w"].shape[1]
    L = len(params["convs"])
    if L < 1:
        raise ValueError("fused kernel expects at least one ADGNConv layer")

    # Lane-dense padding (128) for all feature dims; node dim padded to tiles.
    Hp = _round_up(H, 128)
    INp = _round_up(Fin, 128)
    OUTp = _round_up(OUT, 128)
    Np = _round_up(N, 256)
    tm, tk = _choose_tiles(Np, max_resident_a_bytes)

    # Normalized adjacency in bf16 (halves the dominant HBM stream); padded
    # rows/cols are zero so padded nodes never contaminate real rows.
    A = _pad2(build_norm_adj(edge_index, N), Np, Np).astype(jnp.bfloat16)

    x_p = _pad2(x.astype(jnp.float32), Np, INp)
    emb_w = _pad2(params["emb_w"], INp, Hp)

    eye_h = _pad2(jnp.eye(H, dtype=jnp.float32), Hp, Hp)
    wlin_l, wanti_l, bias_l = [], [], []
    for conv in params["convs"]:
        Wp = _pad2(conv["Weights"], Hp, Hp)
        W = Wp - Wp.T - gamma * eye_h if antisymmetric else Wp
        wanti_l.append(W)
        wlin_l.append(_pad2(conv["lin_w"], Hp, Hp))
        bias_l.append(_pad2(conv["bias"], 1, Hp))
    wlin_stack = jnp.stack(wlin_l)            # [L, Hp, Hp]
    wanti_stack = jnp.stack(wanti_l)          # [L, Hp, Hp]
    bias_stack = jnp.stack(bias_l)            # [L, 1, Hp]

    out_w = _pad2(params["out_w"], Hp, OUTp)
    out_b = _pad2(params["out_b"], 1, OUTp)

    emb_p, out_p = _adgn_stack_call(
        x_p, emb_w, A, wlin_stack, wanti_stack, bias_stack, out_w, out_b,
        epsilon=epsilon, tm=tm, tk=tk)

    return emb_p[:N, :H], out_p[:N, :OUT]


# -----------------------------------------------------------------------------
# Pure-JAX reference (f32 everywhere) for validation
# -----------------------------------------------------------------------------
def adgn_reference(params, x, edge_index, epsilon=0.1, gamma=0.1, antisymmetric=True):
    N = x.shape[0]
    H = params["emb_w"].shape[1]
    A = build_norm_adj(edge_index, N)
    x = x @ params["emb_w"]
    eye_h = jnp.eye(H, dtype=jnp.float32)
    emb = None
    for conv in params["convs"]:
        W = (conv["Weights"] - conv["Weights"].T - gamma * eye_h
             if antisymmetric else conv["Weights"])
        t = x @ conv["lin_w"]
        aggr = A @ t
        x = x + epsilon * jnp.tanh(x @ W + aggr + conv["bias"])
        emb = x
    out = x @ params["out_w"] + params["out_b"]
    return emb, out


def _ring_edges(n):
    src = jnp.arange(n, dtype=jnp.int32)
    dst = (src + 1) % n
    return jnp.stack(
        [jnp.concatenate([src, dst]), jnp.concatenate([dst, src])], axis=0)


def _check(params, x, edge_index, **kwargs):
    emb, out = adgn_forward(params, x, edge_index, epsilon=0.1, gamma=0.1, **kwargs)
    jax.block_until_ready((emb, out))
    emb_ref, out_ref = adgn_reference(params, x, edge_index, epsilon=0.1, gamma=0.1)
    err_emb = float(jnp.max(jnp.abs(emb - emb_ref)))
    err_out = float(jnp.max(jnp.abs(out - out_ref)))
    assert err_emb < 5e-2, f"emb mismatch: {err_emb}"
    assert err_out < 5e-2, f"out mismatch: {err_out}"
    return emb, out


# -----------------------------------------------------------------------------
# Demo
# -----------------------------------------------------------------------------
if __name__ == "__main__":
    key = jax.random.PRNGKey(0)
    N_NODES = 16
    IN_CH = 8
    HIDDEN = 32
    OUT_CH = 4
    NUM_LAYERS = 3  # -> 2 ADGNConv layers, like the torch module

    kx, kp, kx2 = jax.random.split(key, 3)
    x = jax.random.normal(kx, (N_NODES, IN_CH), jnp.float32)
    edge_index = _ring_edges(N_NODES)
    params = init_params(kp, IN_CH, HIDDEN, OUT_CH, NUM_LAYERS)

    # Main demo (A small -> resident-A path, single tile).
    emb, out = _check(params, x, edge_index)
    assert emb.shape == (N_NODES, HIDDEN)
    assert out.shape == (N_NODES, OUT_CH)

    # Second check forcing the streamed-tile path (multi row/col tiles).
    N_BIG = 600
    x_big = jax.random.normal(kx2, (N_BIG, IN_CH), jnp.float32)
    _check(params, x_big, _ring_edges(N_BIG), max_resident_a_bytes=0)

    print("KERNEL_OK")
</pallas_src>

<mosaic_0001>
module attributes {stable_mosaic.version = 11 : i64} {
  func.func @_adgn_stack_kernel(%arg0: i32, %arg1: i32, %arg2: i32, %arg3: memref<256x128xf32, #tpu.memory_space<vmem>>, %arg4: memref<128x128xf32, #tpu.memory_space<vmem>>, %arg5: memref<256x256xbf16, #tpu.memory_space<vmem>>, %arg6: memref<1x128x128xf32, #tpu.memory_space<vmem>>, %arg7: memref<1x128x128xf32, #tpu.memory_space<vmem>>, %arg8: memref<1x1x128xf32, #tpu.memory_space<vmem>>, %arg9: memref<128x128xf32, #tpu.memory_space<vmem>>, %arg10: memref<1x128xf32, #tpu.memory_space<vmem>>, %arg11: memref<256x128xf32, #tpu.memory_space<vmem>>, %arg12: memref<256x128xf32, #tpu.memory_space<vmem>>, %arg13: memref<256x128xf32, #tpu.memory_space<vmem>>, %arg14: memref<256x128xbf16, #tpu.memory_space<vmem>>, %arg15: memref<256x128xf32, #tpu.memory_space<vmem>>) attributes {dimension_semantics = [#tpu.dimension_semantics<arbitrary>, #tpu.dimension_semantics<arbitrary>, #tpu.dimension_semantics<arbitrary>], iteration_bounds = array<i64: 2, 1, 1>, scalar_prefetch = 0 : i64, scratch_operands = 3 : i64, tpu.core_type = #tpu.core_type<tc>, window_params = [{pipeline_mode = #tpu.pipeline_mode<synchronous>, transform_indices = @transform_0, window_bounds = array<i64: 256, 128>}, {pipeline_mode = #tpu.pipeline_mode<synchronous>, transform_indices = @transform_1, window_bounds = array<i64: 128, 128>}, {transform_indices = @transform_2, window_bounds = array<i64: 256, 256>}, {transform_indices = @transform_3, window_bounds = array<i64: 1, 128, 128>}, {transform_indices = @transform_4, window_bounds = array<i64: 1, 128, 128>}, {transform_indices = @transform_5, window_bounds = array<i64: 1, 1, 128>}, {pipeline_mode = #tpu.pipeline_mode<synchronous>, transform_indices = @transform_6, window_bounds = array<i64: 128, 128>}, {pipeline_mode = #tpu.pipeline_mode<synchronous>, transform_indices = @transform_7, window_bounds = array<i64: 1, 128>}, {transform_indices = @transform_8, window_bounds = array<i64: 256, 128>}, {transform_indices = @transform_9, window_bounds = array<i64: 256, 128>}]} {
    %c0_i32 = arith.constant 0 : i32
    %0 = arith.cmpi eq, %arg0, %c0_i32 : i32
    %c0_i32_0 = arith.constant 0 : i32
    %1 = arith.cmpi eq, %arg1, %c0_i32_0 : i32
    %2 = arith.andi %0, %1 : i1
    %c0_i32_1 = arith.constant 0 : i32
    %3 = arith.cmpi eq, %arg2, %c0_i32_1 : i32
    %4 = arith.andi %2, %3 : i1
    %5 = arith.extui %4 : i1 to i32
    %c0_i32_2 = arith.constant 0 : i32
    %6 = arith.cmpi ne, %5, %c0_i32_2 : i32
    scf.if %6 {
      %c0_16 = arith.constant 0 : index
      %c0_17 = arith.constant 0 : index
      %27 = vector.load %arg3[%c0_16, %c0_17] : memref<256x128xf32, #tpu.memory_space<vmem>>, vector<256x128xf32>
      %c0_18 = arith.constant 0 : index
      %c0_19 = arith.constant 0 : index
      %28 = vector.load %arg4[%c0_18, %c0_19] : memref<128x128xf32, #tpu.memory_space<vmem>>, vector<128x128xf32>
      %cst_20 = arith.constant dense<0.000000e+00> : vector<256x128xf32>
      %29 = tpu.matmul %27, %28, %cst_20 {dimension_numbers = #tpu.dot_dimension_numbers<[1], [0], [0], [1], [0, 0, 1, 1], [], []>} : vector<256x128xf32>, vector<128x128xf32>, vector<256x128xf32> -> vector<256x128xf32>
      %c0_21 = arith.constant 0 : index
      %c0_22 = arith.constant 0 : index
      %30 = vector.load %arg13[%c0_21, %c0_22] : memref<256x128xf32, #tpu.memory_space<vmem>>, vector<256x128xf32>
      tpu.vector_store %arg13[%c0_21, %c0_22], %29 {strides = array<i32>} : memref<256x128xf32, #tpu.memory_space<vmem>>, vector<256x128xf32>,
    } else {
    }
    %c0_i32_3 = arith.constant 0 : i32
    %7 = arith.cmpi eq, %arg1, %c0_i32_3 : i32
    %c0_i32_4 = arith.constant 0 : i32
    %8 = arith.cmpi eq, %arg2, %c0_i32_4 : i32
    %9 = arith.andi %7, %8 : i1
    %10 = arith.extui %9 : i1 to i32
    %c0_i32_5 = arith.constant 0 : i32
    %11 = arith.cmpi ne, %10, %c0_i32_5 : i32
    scf.if %11 {
      %c0_16 = arith.constant 0 : index
      %c0_17 = arith.constant 0 : index
      %27 = vector.load %arg13[%c0_16, %c0_17] : memref<256x128xf32, #tpu.memory_space<vmem>>, vector<256x128xf32>
      %c0_18 = arith.constant 0 : index
      %c0_19 = arith.constant 0 : index
      %c0_20 = arith.constant 0 : index
      %28 = vector.load %arg6[%c0_18, %c0_19, %c0_20] : memref<1x128x128xf32, #tpu.memory_space<vmem>>, vector<1x128x128xf32>
      %29 = vector.shape_cast %28 : vector<1x128x128xf32> to vector<128x128xf32>
      %cst_21 = arith.constant dense<0.000000e+00> : vector<256x128xf32>
      %30 = tpu.matmul %27, %29, %cst_21 {dimension_numbers = #tpu.dot_dimension_numbers<[1], [0], [0], [1], [0, 0, 1, 1], [], []>} : vector<256x128xf32>, vector<128x128xf32>, vector<256x128xf32> -> vector<256x128xf32>
      %31 = arith.truncf %30 : vector<256x128xf32> to vector<256x128xbf16>
      %c0_22 = arith.constant 0 : index
      %c0_23 = arith.constant 0 : index
      %32 = vector.load %arg14[%c0_22, %c0_23] : memref<256x128xbf16, #tpu.memory_space<vmem>>, vector<256x128xbf16>
      tpu.vector_store %arg14[%c0_22, %c0_23], %31 {strides = array<i32>} : memref<256x128xbf16, #tpu.memory_space<vmem>>, vector<256x128xbf16>,
    } else {
    }
    %c0_i32_6 = arith.constant 0 : i32
    %12 = arith.cmpi eq, %arg2, %c0_i32_6 : i32
    %13 = arith.extui %12 : i1 to i32
    %c0_i32_7 = arith.constant 0 : i32
    %14 = arith.cmpi ne, %13, %c0_i32_7 : i32
    scf.if %14 {
      %cst_16 = arith.constant 0.000000e+00 : f32
      %27 = vector.broadcast %cst_16 : f32 to vector<256x128xf32>
      %c0_17 = arith.constant 0 : index
      %c0_18 = arith.constant 0 : index
      %28 = vector.load %arg15[%c0_17, %c0_18] : memref<256x128xf32, #tpu.memory_space<vmem>>, vector<256x128xf32>
      tpu.vector_store %arg15[%c0_17, %c0_18], %27 {strides = array<i32>} : memref<256x128xf32, #tpu.memory_space<vmem>>, vector<256x128xf32>,
    } else {
    }
    %c256_i32 = arith.constant 256 : i32
    %15 = arith.muli %arg2, %c256_i32 : i32
    %16 = tpu.assume_multiple %15, 256 : i32
    %c0 = arith.constant 0 : index
    %c0_8 = arith.constant 0 : index
    %17 = vector.load %arg15[%c0, %c0_8] : memref<256x128xf32, #tpu.memory_space<vmem>>, vector<256x128xf32>
    %c0_9 = arith.constant 0 : index
    %c0_10 = arith.constant 0 : index
    %18 = vector.load %arg5[%c0_9, %c0_10] : memref<256x256xbf16, #tpu.memory_space<vmem>>, vector<256x256xbf16>
    %19 = arith.index_cast %16 : i32 to index
    %c0_11 = arith.constant 0 : index
    %20 = vector.load %arg14[%19, %c0_11] : memref<256x128xbf16, #tpu.memory_space<vmem>>, vector<256x128xbf16>
    %cst = arith.constant dense<0.000000e+00> : vector<256x128xf32>
    %21 = tpu.matmul %18, %20, %cst {dimension_numbers = #tpu.dot_dimension_numbers<[1], [0], [0], [1], [0, 0, 1, 1], [], []>} : vector<256x256xbf16>, vector<256x128xbf16>, vector<256x128xf32> -> vector<256x128xf32>
    %22 = arith.addf %17, %21 : vector<256x128xf32>
    %c0_12 = arith.constant 0 : index
    %c0_13 = arith.constant 0 : index
    %23 = vector.load %arg15[%c0_12, %c0_13] : memref<256x128xf32, #tpu.memory_space<vmem>>, vector<256x128xf32>
    tpu.vector_store %arg15[%c0_12, %c0_13], %22 {strides = array<i32>} : memref<256x128xf32, #tpu.memory_space<vmem>>, vector<256x128xf32>,
    %c0_i32_14 = arith.constant 0 : i32
    %24 = arith.cmpi eq, %arg2, %c0_i32_14 : i32
    %25 = arith.extui %24 : i1 to i32
    %c0_i32_15 = arith.constant 0 : i32
    %26 = arith.cmpi ne, %25, %c0_i32_15 : i32
    scf.if %26 {
      %c256_i32_16 = arith.constant 256 : i32
      %27 = arith.muli %arg1, %c256_i32_16 : i32
      %28 = tpu.assume_multiple %27, 256 : i32
      %29 = arith.index_cast %28 : i32 to index
      %c0_17 = arith.constant 0 : index
      %30 = vector.load %arg13[%29, %c0_17] : memref<256x128xf32, #tpu.memory_space<vmem>>, vector<256x128xf32>
      %c0_18 = arith.constant 0 : index
      %c0_19 = arith.constant 0 : index
      %c0_20 = arith.constant 0 : index
      %31 = vector.load %arg7[%c0_18, %c0_19, %c0_20] : memref<1x128x128xf32, #tpu.memory_space<vmem>>, vector<1x128x128xf32>
      %32 = vector.shape_cast %31 : vector<1x128x128xf32> to vector<128x128xf32>
      %cst_21 = arith.constant dense<0.000000e+00> : vector<256x128xf32>
      %33 = tpu.matmul %30, %32, %cst_21 {dimension_numbers = #tpu.dot_dimension_numbers<[1], [0], [0], [1], [0, 0, 1, 1], [], []>} : vector<256x128xf32>, vector<128x128xf32>, vector<256x128xf32> -> vector<256x128xf32>
      %c0_22 = arith.constant 0 : index
      %c0_23 = arith.constant 0 : index
      %34 = vector.load %arg15[%c0_22, %c0_23] : memref<256x128xf32, #tpu.memory_space<vmem>>, vector<256x128xf32>
      %35 = arith.addf %33, %34 : vector<256x128xf32>
      %c0_24 = arith.constant 0 : index
      %c0_25 = arith.constant 0 : index
      %c0_26 = arith.constant 0 : index
      %36 = vector.load %arg8[%c0_24, %c0_25, %c0_26] : memref<1x1x128xf32, #tpu.memory_space<vmem>>, vector<1x1x128xf32>
      %37 = vector.shape_cast %36 : vector<1x1x128xf32> to vector<1x128xf32>
      %38 = vector.broadcast %37 : vector<1x128xf32> to vector<256x128xf32>
      %39 = arith.addf %35, %38 : vector<256x128xf32>
      %40 = math.tanh %39 : vector<256x128xf32>
      %cst_27 = arith.constant 1.000000e-01 : f32
      %41 = vector.broadcast %cst_27 : f32 to vector<256x128xf32>
      %42 = arith.mulf %41, %40 : vector<256x128xf32>
      %43 = arith.addf %30, %42 : vector<256x128xf32>
      %44 = arith.index_cast %28 : i32 to index
      %c0_28 = arith.constant 0 : index
      %45 = vector.load %arg13[%44, %c0_28] : memref<256x128xf32, #tpu.memory_space<vmem>>, vector<256x128xf32>
      tpu.vector_store %arg13[%44, %c0_28], %43 {strides = array<i32>} : memref<256x128xf32, #tpu.memory_space<vmem>>, vector<256x128xf32>,
      %c1_i32 = arith.constant 1 : i32
      %46 = arith.cmpi eq, %arg0, %c1_i32 : i32
      %47 = arith.extui %46 : i1 to i32
      %c0_i32_29 = arith.constant 0 : i32
      %48 = arith.cmpi ne, %47, %c0_i32_29 : i32
      scf.if %48 {
        %c0_30 = arith.constant 0 : index
        %c0_31 = arith.constant 0 : index
        %49 = vector.load %arg11[%c0_30, %c0_31] : memref<256x128xf32, #tpu.memory_space<vmem>>, vector<256x128xf32>
        tpu.vector_store %arg11[%c0_30, %c0_31], %43 {strides = array<i32>} : memref<256x128xf32, #tpu.memory_space<vmem>>, vector<256x128xf32>,
        %c0_32 = arith.constant 0 : index
        %c0_33 = arith.constant 0 : index
        %50 = vector.load %arg9[%c0_32, %c0_33] : memref<128x128xf32, #tpu.memory_space<vmem>>, vector<128x128xf32>
        %cst_34 = arith.constant dense<0.000000e+00> : vector<256x128xf32>
        %51 = tpu.matmul %43, %50, %cst_34 {dimension_numbers = #tpu.dot_dimension_numbers<[1], [0], [0], [1], [0, 0, 1, 1], [], []>} : vector<256x128xf32>, vector<128x128xf32>, vector<256x128xf32> -> vector<256x128xf32>
        %c0_35 = arith.constant 0 : index
        %c0_36 = arith.constant 0 : index
        %52 = vector.load %arg10[%c0_35, %c0_36] : memref<1x128xf32, #tpu.memory_space<vmem>>, vector<1x128xf32>
        %53 = vector.broadcast %52 : vector<1x128xf32> to vector<256x128xf32>
        %54 = arith.addf %51, %53 : vector<256x128xf32>
        %c0_37 = arith.constant 0 : index
        %c0_38 = arith.constant 0 : index
        %55 = vector.load %arg12[%c0_37, %c0_38] : memref<256x128xf32, #tpu.memory_space<vmem>>, vector<256x128xf32>
        tpu.vector_store %arg12[%c0_37, %c0_38], %54 {strides = array<i32>} : memref<256x128xf32, #tpu.memory_space<vmem>>, vector<256x128xf32>,
      } else {
      }
    } else {
    }
    return
  }
  func.func @transform_0(%arg0: i32, %arg1: i32, %arg2: i32) -> (i32, i32) {
    %c0_i32 = arith.constant 0 : i32
    %c0_i32_0 = arith.constant 0 : i32
    %c0_i32_1 = arith.constant 0 : i32
    return %c0_i32, %c0_i32_0 : i32, i32
  }
  func.func @transform_1(%arg0: i32, %arg1: i32, %arg2: i32) -> (i32, i32) {
    %c0_i32 = arith.constant 0 : i32
    %c0_i32_0 = arith.constant 0 : i32
    %c0_i32_1 = arith.constant 0 : i32
    return %c0_i32, %c0_i32_0 : i32, i32
  }
  func.func @transform_2(%arg0: i32, %arg1: i32, %arg2: i32) -> (i32, i32) {
    %c0_i32 = arith.constant 0 : i32
    return %arg1, %arg2 : i32, i32
  }
  func.func @transform_3(%arg0: i32, %arg1: i32, %arg2: i32) -> (i32, i32, i32) {
    %c0_i32 = arith.constant 0 : i32
    %c0_i32_0 = arith.constant 0 : i32
    %c0_i32_1 = arith.constant 0 : i32
    return %arg0, %c0_i32, %c0_i32_0 : i32, i32, i32
  }
  func.func @transform_4(%arg0: i32, %arg1: i32, %arg2: i32) -> (i32, i32, i32) {
    %c0_i32 = arith.constant 0 : i32
    %c0_i32_0 = arith.constant 0 : i32
    %c0_i32_1 = arith.constant 0 : i32
    return %arg0, %c0_i32, %c0_i32_0 : i32, i32, i32
  }
  func.func @transform_5(%arg0: i32, %arg1: i32, %arg2: i32) -> (i32, i32, i32) {
    %c0_i32 = arith.constant 0 : i32
    %c0_i32_0 = arith.constant 0 : i32
    %c0_i32_1 = arith.constant 0 : i32
    return %arg0, %c0_i32, %c0_i32_0 : i32, i32, i32
  }
  func.func @transform_6(%arg0: i32, %arg1: i32, %arg2: i32) -> (i32, i32) {
    %c0_i32 = arith.constant 0 : i32
    %c0_i32_0 = arith.constant 0 : i32
    %c0_i32_1 = arith.constant 0 : i32
    return %c0_i32, %c0_i32_0 : i32, i32
  }
  func.func @transform_7(%arg0: i32, %arg1: i32, %arg2: i32) -> (i32, i32) {
    %c0_i32 = arith.constant 0 : i32
    %c0_i32_0 = arith.constant 0 : i32
    %c0_i32_1 = arith.constant 0 : i32
    return %c0_i32, %c0_i32_0 : i32, i32
  }
  func.func @transform_8(%arg0: i32, %arg1: i32, %arg2: i32) -> (i32, i32) {
    %c1_i32 = arith.constant 1 : i32
    %0 = arith.cmpi eq, %arg0, %c1_i32 : i32
    %c0_i32 = arith.constant 0 : i32
    %1 = arith.select %0, %arg1, %c0_i32 : i32
    %c0_i32_0 = arith.constant 0 : i32
    %c0_i32_1 = arith.constant 0 : i32
    return %1, %c0_i32_0 : i32, i32
  }
  func.func @transform_9(%arg0: i32, %arg1: i32, %arg2: i32) -> (i32, i32) {
    %c1_i32 = arith.constant 1 : i32
    %0 = arith.cmpi eq, %arg0, %c1_i32 : i32
    %c0_i32 = arith.constant 0 : i32
    %1 = arith.select %0, %arg1, %c0_i32 : i32
    %c0_i32_0 = arith.constant 0 : i32
    %c0_i32_1 = arith.constant 0 : i32
    return %1, %c0_i32_0 : i32, i32
  }
}

</mosaic_0001>

<llo_original>
// kernel: tpu_custom_call.1
$region0: #{tpu_custom_call.1}
  #allocation0 [shape = 'u32[]', space=smem, size = 0x4, offset = 0x4, fixed_abs, tag = 'smem constant byte address 0x4 - core index']
  #allocation1 [shape = 'u32[72,128]{1,0:T(1,128)}', space=vmem, size = 0x9000, scoped, tag = 'internal scratch']
  #allocation2 [shape = 'f32[256,128]{1,0:T(8,128)}', space=vmem, size = 0x20000, scoped, tag = 'scratch operand']
  #allocation3 [shape = 'bf16[256,128]{1,0:T(8,128)(2,1)}', space=vmem, size = 0x10000, scoped, tag = 'scratch operand']
  #allocation4 [shape = 'f32[256,128]{1,0:T(8,128)}', space=vmem, size = 0x20000, scoped, tag = 'scratch operand']
  %s0 = inlined_call_operand.hbm [shape: f32[256,128], index: 0, kind: input, shape index: {}]
  %s1 = inlined_call_operand.hbm [shape: f32[128,128], index: 1, kind: input, shape index: {}]
  %s2 = inlined_call_operand.hbm [shape: bf16[256,256], index: 2, kind: input, shape index: {}]
  %s3 = inlined_call_operand.hbm [shape: f32[2,128,128], index: 3, kind: input, shape index: {}]
  %s4 = inlined_call_operand.hbm [shape: f32[2,128,128], index: 4, kind: input, shape index: {}]
  %s5 = inlined_call_operand.vmem [shape: f32[2,1,128], index: 5, kind: input, shape index: {}]
  %s6 = inlined_call_operand.hbm [shape: f32[128,128], index: 6, kind: input, shape index: {}]
  %s7 = inlined_call_operand.vmem [shape: f32[1,128], index: 7, kind: input, shape index: {}]
  %s8 = inlined_call_operand.hbm [shape: f32[256,128], index: 8, kind: output, shape index: {0}]
  %s9 = inlined_call_operand.hbm [shape: f32[256,128], index: 9, kind: output, shape index: {1}]
  %10 = xla_tuple %s8, %s9
  %s11 = sld [smem:[#allocation0]]
  $region117: #{tpu_custom_call.1} parent=0
    _
  %s13 = ssub.s32 1, %s11
  %s14 = scalar_select 0, %s13, %s11
  $region1: #{tpu_custom_call.1} parent=0
    #allocation5 [shape = 'u8[131072]{0}', space=vmem, size = 0x20000, scoped, tag = 'input window, operand 0, single buffered']
    #allocation6 [shape = 's32[2]{0}', space=sflag, size = 0x8, scoped, tag = 'scoped memory for tpu_custom_call.1']
    #allocation7 [shape = 's32[2]{0}', space=sflag, size = 0x8, scoped, tag = 'scoped memory for tpu_custom_call.1']
    #allocation8 [shape = 'u8[65536]{0}', space=vmem, size = 0x10000, scoped, tag = 'input window, operand 1, single buffered']
    #allocation9 [shape = 's32[1]{0}', space=sflag, size = 0x4, scoped, tag = 'scoped memory for tpu_custom_call.1']
    #allocation10 [shape = 'u8[131072]{0}', space=vmem, size = 0x20000, scoped, tag = 'input window, operand 2, single buffered']
    #allocation11 [shape = 'u8[131072]{0}', space=vmem, size = 0x20000, scoped, tag = 'input window, operand 3']
    #allocation12 [shape = 's32[2]{0}', space=sflag, size = 0x8, scoped, tag = 'scoped memory for tpu_custom_call.1']
    #allocation13 [shape = 'u8[131072]{0}', space=vmem, size = 0x20000, scoped, tag = 'input window, operand 4']
    #allocation14 [shape = 'u8[65536]{0}', space=vmem, size = 0x10000, scoped, tag = 'input window, operand 6, single buffered']
    #allocation15 [shape = 's32[1]{0}', space=sflag, size = 0x4, scoped, tag = 'scoped memory for tpu_custom_call.1']
    #allocation16 [shape = 'u8[262144]{0}', space=vmem, size = 0x40000, scoped, tag = 'output window, operand 0']
    #allocation17 [shape = 'u8[262144]{0}', space=vmem, size = 0x40000, scoped, tag = 'output window, operand 1']
    #allocation18 [shape = 's32[2]{0}', space=sflag, size = 0x8, scoped, tag = 'scoped memory for tpu_custom_call.1']
    %15 = vsyncpa [#allocation6], 0
    %16 = vsyncpa [#allocation9], 0
    %17 = vsyncpa [#allocation12], 0
    %s18 = scalar_lea.sflag [#allocation12], 1
    %19 = vsyncpa %s18, 0
    %20 = vsyncpa [#allocation15], 0
    %21 = vsyncpa [#allocation7], 0
    %s22 = scalar_lea.sflag [#allocation7], 1
    %23 = vsyncpa %s22, 0
    %24 = vsyncpa [#allocation18], 0
    %s25 = scalar_lea.sflag [#allocation18], 1
    %26 = vsyncpa %s25, 0
    loop: start=0, step=1, limit=4
    $region2: #{tpu_custom_call.1} parent=1 // loop_pre_header
      _
    $region3: #{tpu_custom_call.1} parent=1 // loop_header
      %s28 = sphi 0, %s32
      %p29 = scmp.ge.s32.totalorder %s28, 4
      %s35 = sphi 0, %s54
      %s36 = sphi 0, %s50
      %s37 = sphi 0, %s46
      %s38 = sphi 0, %s35
      %s39 = sphi 0, %s36
      %s40 = sphi 0, %s37
      %s41 = sphi 0, %s38
      %s42 = sphi 0, %s39
      %s43 = sphi 0, %s40
      %s55 = sphi 0, %s55
      %s57 = sphi 0, %s55
      %s58 = sphi 0, %s57
      %s72 = sphi 0, %s58
      %s76 = sphi 0, %s76
      %s78 = sphi 0, %s76
      %s79 = sphi 0, %s78
      %s93 = sphi 0, %s79
      %s101 = sphi 0, %s103
      %s104 = sphi 0, %s101
      %s105 = sphi 0, %s104
      %s121 = sphi 0, %s105
      %s127 = sphi 0, %s129
      %s130 = sphi 0, %s127
      %s131 = sphi 0, %s130
      %s147 = sphi 0, %s131
      %s153 = sphi 0, %s155
      %s156 = sphi 0, %s153
      %s157 = sphi 0, %s156
      %s173 = sphi 0, %s157
      %s179 = sphi 0, %s181
      %s182 = sphi 0, %s179
      %s183 = sphi 0, %s182
      %s199 = sphi 0, %s183
      %s203 = sphi 0, %s203
      %s205 = sphi 0, %s203
      %s206 = sphi 0, %s205
      %s220 = sphi 0, %s206
      %s224 = sphi 0, %s224
      %s226 = sphi 0, %s224
      %s227 = sphi 0, %s226
      %s241 = sphi 0, %s227
      %s251 = sphi 0, %s253
      %s254 = sphi 0, %s251
      %s255 = sphi 0, %s254
      %s271 = sphi 0, %s255
      %s281 = sphi 0, %s283
      %s284 = sphi 0, %s281
      %s285 = sphi 0, %s284
      %s301 = sphi 0, %s285
    $region4: #{tpu_custom_call.1} parent=1 // loop_header_branch
      %31 = sbr.rel (%p29) target = $region8
    $region5: #{tpu_custom_call.1} parent=1 // loop_body
      %s33 = ssub.s32 %s28, 1
      %s34 = ssub.s32 %s28, 2
      %s44 = sadd.s32 1, %s37
      %p45 = scmp.ge.s32.totalorder %s44, 1
      %s46 = scalar_select %p45, 0, %s44
      %s47 = sadd.s32 1, %s36
      %s48 = scalar_select %p45, %s47, %s36
      %p49 = scmp.ge.s32.totalorder %s48, 1
      %s50 = scalar_select %p49, 0, %s48
      %s51 = sadd.s32 1, %s35
      %s52 = scalar_select %p49, %s51, %s35
      %p53 = scmp.ge.s32.totalorder %s52, 2
      %s54 = scalar_select %p53, 0, %s52
      %s56 = sadd.s32 %s55, 1
      %p59 = scmp.eq.s32.totalorder %s28, 1
      %p60 = scmp.ne.s32.totalorder %s55, %s57
      %p61 = scmp.eq.s32.totalorder %s28, 0
      %p62 = por %p60, %p61
      %p63 = scmp.ne.s32.totalorder %s55, %s57
      %p64 = scmp.eq.s32.totalorder %s33, 1
      %p65 = por %p63, %p64
      %p66 = scmp.ne.s32.totalorder %s57, %s58
      %p67 = scmp.eq.s32.totalorder %s33, 0
      %p68 = por %p66, %p67
      %p69 = scmp.ne.s32.totalorder %s57, %s58
      %p70 = scmp.eq.s32.totalorder %s34, 1
      %p71 = por %p69, %p70
      %p73 = scmp.ne.s32.totalorder %s58, %s72
      %p74 = scmp.eq.s32.totalorder %s34, 0
      %p75 = por %p73, %p74
      %s77 = sadd.s32 %s76, 1
      %p80 = scmp.eq.s32.totalorder %s28, 1
      %p81 = scmp.ne.s32.totalorder %s76, %s78
      %p82 = scmp.eq.s32.totalorder %s28, 0
      %p83 = por %p81, %p82
      %p84 = scmp.ne.s32.totalorder %s76, %s78
      %p85 = scmp.eq.s32.totalorder %s33, 1
      %p86 = por %p84, %p85
      %p87 = scmp.ne.s32.totalorder %s78, %s79
      %p88 = scmp.eq.s32.totalorder %s33, 0
      %p89 = por %p87, %p88
      %p90 = scmp.ne.s32.totalorder %s78, %s79
      %p91 = scmp.eq.s32.totalorder %s34, 1
      %p92 = por %p90, %p91
      %p94 = scmp.ne.s32.totalorder %s79, %s93
      %p95 = scmp.eq.s32.totalorder %s34, 0
      %p96 = por %p94, %p95
      %s97 = ssub.s32 %s36, %s50
      %s98 = ssub.s32 %s37, %s46
      %s99 = sor.u32 %s97, %s98
      %p100 = scmp.eq.s32.totalorder %s99, 0
      %s102 = sadd.s32 %s101, 1
      %s103 = scalar_select %p100, %s101, %s102
      %p106 = pneg %p100
      %p107 = scmp.eq.s32.totalorder %s28, 1
      %p108 = por %p106, %p107
      %p109 = scmp.ne.s32.totalorder %s101, %s104
      %p110 = scmp.eq.s32.totalorder %s28, 0
      %p111 = por %p109, %p110
      %p112 = scmp.ne.s32.totalorder %s101, %s104
      %p113 = scmp.eq.s32.totalorder %s33, 1
      %p114 = por %p112, %p113
      %p115 = scmp.ne.s32.totalorder %s104, %s105
      %p116 = scmp.eq.s32.totalorder %s33, 0
      %p117 = por %p115, %p116
      %p118 = scmp.ne.s32.totalorder %s104, %s105
      %p119 = scmp.eq.s32.totalorder %s34, 1
      %p120 = por %p118, %p119
      %p122 = scmp.ne.s32.totalorder %s105, %s121
      %p123 = scmp.eq.s32.totalorder %s34, 0
      %p124 = por %p122, %p123
      %s125 = ssub.s32 %s35, %s54
      %p126 = scmp.eq.s32.totalorder %s125, 0
      %s128 = sadd.s32 %s127, 1
      %s129 = scalar_select %p126, %s127, %s128
      %p132 = pneg %p126
      %p133 = scmp.eq.s32.totalorder %s28, 1
      %p134 = por %p132, %p133
      %p135 = scmp.ne.s32.totalorder %s127, %s130
      %p136 = scmp.eq.s32.totalorder %s28, 0
      %p137 = por %p135, %p136
      %p138 = scmp.ne.s32.totalorder %s127, %s130
      %p139 = scmp.eq.s32.totalorder %s33, 1
      %p140 = por %p138, %p139
      %p141 = scmp.ne.s32.totalorder %s130, %s131
      %p142 = scmp.eq.s32.totalorder %s33, 0
      %p143 = por %p141, %p142
      %p144 = scmp.ne.s32.totalorder %s130, %s131
      %p145 = scmp.eq.s32.totalorder %s34, 1
      %p146 = por %p144, %p145
      %p148 = scmp.ne.s32.totalorder %s131, %s147
      %p149 = scmp.eq.s32.totalorder %s34, 0
      %p150 = por %p148, %p149
      %s151 = ssub.s32 %s35, %s54
      %p152 = scmp.eq.s32.totalorder %s151, 0
      %s154 = sadd.s32 %s153, 1
      %s155 = scalar_select %p152, %s153, %s154
      %p158 = pneg %p152
      %p159 = scmp.eq.s32.totalorder %s28, 1
      %p160 = por %p158, %p159
      %p161 = scmp.ne.s32.totalorder %s153, %s156
      %p162 = scmp.eq.s32.totalorder %s28, 0
      %p163 = por %p161, %p162
      %p164 = scmp.ne.s32.totalorder %s153, %s156
      %p165 = scmp.eq.s32.totalorder %s33, 1
      %p166 = por %p164, %p165
      %p167 = scmp.ne.s32.totalorder %s156, %s157
      %p168 = scmp.eq.s32.totalorder %s33, 0
      %p169 = por %p167, %p168
      %p170 = scmp.ne.s32.totalorder %s156, %s157
      %p171 = scmp.eq.s32.totalorder %s34, 1
      %p172 = por %p170, %p171
      %p174 = scmp.ne.s32.totalorder %s157, %s173
      %p175 = scmp.eq.s32.totalorder %s34, 0
      %p176 = por %p174, %p175
      %s177 = ssub.s32 %s35, %s54
      %p178 = scmp.eq.s32.totalorder %s177, 0
      %s180 = sadd.s32 %s179, 1
      %s181 = scalar_select %p178, %s179, %s180
      %p184 = pneg %p178
      %p185 = scmp.eq.s32.totalorder %s28, 1
      %p186 = por %p184, %p185
      %p187 = scmp.ne.s32.totalorder %s179, %s182
      %p188 = scmp.eq.s32.totalorder %s28, 0
      %p189 = por %p187, %p188
      %p190 = scmp.ne.s32.totalorder %s179, %s182
      %p191 = scmp.eq.s32.totalorder %s33, 1
      %p192 = por %p190, %p191
      %p193 = scmp.ne.s32.totalorder %s182, %s183
      %p194 = scmp.eq.s32.totalorder %s33, 0
      %p195 = por %p193, %p194
      %p196 = scmp.ne.s32.totalorder %s182, %s183
      %p197 = scmp.eq.s32.totalorder %s34, 1
      %p198 = por %p196, %p197
      %p200 = scmp.ne.s32.totalorder %s183, %s199
      %p201 = scmp.eq.s32.totalorder %s34, 0
      %p202 = por %p200, %p201
      %s204 = sadd.s32 %s203, 1
      %p207 = scmp.eq.s32.totalorder %s28, 1
      %p208 = scmp.ne.s32.totalorder %s203, %s205
      %p209 = scmp.eq.s32.totalorder %s28, 0
      %p210 = por %p208, %p209
      %p211 = scmp.ne.s32.totalorder %s203, %s205
      %p212 = scmp.eq.s32.totalorder %s33, 1
      %p213 = por %p211, %p212
      %p214 = scmp.ne.s32.totalorder %s205, %s206
      %p215 = scmp.eq.s32.totalorder %s33, 0
      %p216 = por %p214, %p215
      %p217 = scmp.ne.s32.totalorder %s205, %s206
      %p218 = scmp.eq.s32.totalorder %s34, 1
      %p219 = por %p217, %p218
      %p221 = scmp.ne.s32.totalorder %s206, %s220
      %p222 = scmp.eq.s32.totalorder %s34, 0
      %p223 = por %p221, %p222
      %s225 = sadd.s32 %s224, 1
      %p228 = scmp.eq.s32.totalorder %s28, 1
      %p229 = scmp.ne.s32.totalorder %s224, %s226
      %p230 = scmp.eq.s32.totalorder %s28, 0
      %p231 = por %p229, %p230
      %p232 = scmp.ne.s32.totalorder %s224, %s226
      %p233 = scmp.eq.s32.totalorder %s33, 1
      %p234 = por %p232, %p233
      %p235 = scmp.ne.s32.totalorder %s226, %s227
      %p236 = scmp.eq.s32.totalorder %s33, 0
      %p237 = por %p235, %p236
      %p238 = scmp.ne.s32.totalorder %s226, %s227
      %p239 = scmp.eq.s32.totalorder %s34, 1
      %p240 = por %p238, %p239
      %p242 = scmp.ne.s32.totalorder %s227, %s241
      %p243 = scmp.eq.s32.totalorder %s34, 0
      %p244 = por %p242, %p243
      %p245 = scmp.eq.s32.totalorder %s35, 1
      %s246 = scalar_select %p245, %s36, 0
      %p247 = scmp.eq.s32.totalorder %s54, 1
      %s248 = scalar_select %p247, %s50, 0
      %s249 = ssub.s32 %s246, %s248
      %p250 = scmp.eq.s32.totalorder %s249, 0
      %s252 = sadd.s32 %s251, 1
      %s253 = scalar_select %p250, %s251, %s252
      %p256 = pneg %p250
      %p257 = scmp.eq.s32.totalorder %s28, 1
      %p258 = por %p256, %p257
      %p259 = scmp.ne.s32.totalorder %s251, %s254
      %p260 = scmp.eq.s32.totalorder %s28, 0
      %p261 = por %p259, %p260
      %p262 = scmp.ne.s32.totalorder %s251, %s254
      %p263 = scmp.eq.s32.totalorder %s33, 1
      %p264 = por %p262, %p263
      %p265 = scmp.ne.s32.totalorder %s254, %s255
      %p266 = scmp.eq.s32.totalorder %s33, 0
      %p267 = por %p265, %p266
      %p268 = scmp.ne.s32.totalorder %s254, %s255
      %p269 = scmp.eq.s32.totalorder %s34, 1
      %p270 = por %p268, %p269
      %p272 = scmp.ne.s32.totalorder %s255, %s271
      %p273 = scmp.eq.s32.totalorder %s34, 0
      %p274 = por %p272, %p273
      %p275 = scmp.eq.s32.totalorder %s35, 1
      %s276 = scalar_select %p275, %s36, 0
      %p277 = scmp.eq.s32.totalorder %s54, 1
      %s278 = scalar_select %p277, %s50, 0
      %s279 = ssub.s32 %s276, %s278
      %p280 = scmp.eq.s32.totalorder %s279, 0
      %s282 = sadd.s32 %s281, 1
      %s283 = scalar_select %p280, %s281, %s282
      %p286 = pneg %p280
      %p287 = scmp.eq.s32.totalorder %s28, 1
      %p288 = por %p286, %p287
      %p289 = scmp.ne.s32.totalorder %s281, %s284
      %p290 = scmp.eq.s32.totalorder %s28, 0
      %p291 = por %p289, %p290
      %p292 = scmp.ne.s32.totalorder %s281, %s284
      %p293 = scmp.eq.s32.totalorder %s33, 1
      %p294 = por %p292, %p293
      %p295 = scmp.ne.s32.totalorder %s284, %s285
      %p296 = scmp.eq.s32.totalorder %s33, 0
      %p297 = por %p295, %p296
      %p298 = scmp.ne.s32.totalorder %s284, %s285
      %p299 = scmp.eq.s32.totalorder %s34, 1
      %p300 = por %p298, %p299
      %p302 = scmp.ne.s32.totalorder %s285, %s301
      %p303 = scmp.eq.s32.totalorder %s34, 0
      %p304 = por %p302, %p303
      %p305 = scmp.le.s32.totalorder 1, %s28
      %p306 = scmp.lt.s32.totalorder %s28, 3
      %p307 = pnand %p305, %p306
      %p308 = pneg %p307
      // Predicated region
      $region9: #{tpu_custom_call.1} parent=5 // pred_check
        _
      $region10: #{tpu_custom_call.1} parent=5 // pred_check_branch
        %310 = sbr.rel (%p307) target = $region12
      $region11: #{tpu_custom_call.1} parent=5 // pred_region
        %s311 = ssub.s32 %s28, 1
        // Predicated region
        $region13: #{tpu_custom_call.1} parent=11 // pred_check
          %p312 = pneg %p68
        $region14: #{tpu_custom_call.1} parent=11 // pred_check_branch
          %314 = sbr.rel (%p312) target = $region16
        $region15: #{tpu_custom_call.1} parent=11 // pred_region
          %316 = vsyncadd [#allocation6], 0
          %s317 = sshll.u32 %s0, 4
          %s318 = int_to_ptr.hbm [resolvable:$true] %s317
          %s319 = sshll.u32 [#allocation5], 4
          %s320 = int_to_ptr.vmem [resolvable:$true] %s319
          %325 = dma.hbm_to_vmem [thread:$0]  %s318, 4096, %s320, [#allocation6], 128, 128, 8
        $region16: #{tpu_custom_call.1} parent=11 // pred_fallthru
          _
        // Predicated region
        $region17: #{tpu_custom_call.1} parent=11 // pred_check
          %p326 = pneg %p89
        $region18: #{tpu_custom_call.1} parent=11 // pred_check_branch
          %328 = sbr.rel (%p326) target = $region20
        $region19: #{tpu_custom_call.1} parent=11 // pred_region
          %330 = vsyncadd [#allocation9], 0
          %s331 = sshll.u32 %s1, 4
          %s332 = int_to_ptr.hbm [resolvable:$true] %s331
          %s333 = sshll.u32 [#allocation8], 4
          %s334 = int_to_ptr.vmem [resolvable:$true] %s333
          %339 = dma.hbm_to_vmem [thread:$0]  %s332, 2048, %s334, [#allocation9], 128, 128, 8
        $region20: #{tpu_custom_call.1} parent=11 // pred_fallthru
          _
        // Predicated region
        $region21: #{tpu_custom_call.1} parent=11 // pred_check
          %p340 = pneg %p117
        $region22: #{tpu_custom_call.1} parent=11 // pred_check_branch
          %342 = sbr.rel (%p340) target = $region24
        $region23: #{tpu_custom_call.1} parent=11 // pred_region
          %s343 = smul.u32 32, %s39
          %s344 = smul.u32 2, %s40
          %346 = vsyncadd [#allocation9], 0
          %s347 = smul.addr %s343, 2
          %s348 = sadd.s32 %s344, %s347
          %s349 = smul.addr %s348, 4
          %s350 = scalar_lea.hbm %s2, %s349
          %s351 = sshll.u32 %s350, 4
          %s352 = int_to_ptr.hbm [resolvable:$true] %s351
          %s353 = sshll.u32 [#allocation10], 4
          %s354 = int_to_ptr.vmem [resolvable:$true] %s353
          %359 = dma.hbm_to_vmem [thread:$0]  %s352, 4096, %s354, [#allocation9], 128, 128, 8
        $region24: #{tpu_custom_call.1} parent=11 // pred_fallthru
          _
        // Predicated region
        $region25: #{tpu_custom_call.1} parent=11 // pred_check
          %p360 = pneg %p216
        $region26: #{tpu_custom_call.1} parent=11 // pred_check_branch
          %362 = sbr.rel (%p360) target = $region28
        $region27: #{tpu_custom_call.1} parent=11 // pred_region
          %364 = vsyncadd [#allocation15], 0
          %s365 = sshll.u32 %s6, 4
          %s366 = int_to_ptr.hbm [resolvable:$true] %s365
          %s367 = sshll.u32 [#allocation14], 4
          %s368 = int_to_ptr.vmem [resolvable:$true] %s367
          %373 = dma.hbm_to_vmem [thread:$0]  %s366, 2048, %s368, [#allocation15], 128, 128, 8
        $region28: #{tpu_custom_call.1} parent=11 // pred_fallthru
          _
        // Predicated region
        $region29: #{tpu_custom_call.1} parent=11 // pred_check
          %p374 = pneg %p237
        $region30: #{tpu_custom_call.1} parent=11 // pred_check_branch
          %376 = sbr.rel (%p374) target = $region32
        $region31: #{tpu_custom_call.1} parent=11 // pred_region
          _
        $region32: #{tpu_custom_call.1} parent=11 // pred_fallthru
          _
      $region12: #{tpu_custom_call.1} parent=5 // pred_fallthru
        _
      %p377 = scmp.lt.s32.totalorder %s28, 2
      // Predicated region
      $region33: #{tpu_custom_call.1} parent=5 // pred_check
        %p378 = pneg %p377
      $region34: #{tpu_custom_call.1} parent=5 // pred_check_branch
        %380 = sbr.rel (%p378) target = $region36
      $region35: #{tpu_custom_call.1} parent=5 // pred_region
        // Predicated region
        $region37: #{tpu_custom_call.1} parent=35 // pred_check
          %p381 = pneg %p137
        $region38: #{tpu_custom_call.1} parent=35 // pred_check_branch
          %383 = sbr.rel (%p381) target = $region40
        $region39: #{tpu_custom_call.1} parent=35 // pred_region
          %s384 = sand.u32 %s28, 1
          %s385 = scalar_lea.sflag [#allocation12], %s384
          %s386 = sand.u32 %s127, 1
          %s387 = smul.addr %s386, 128
          %s388 = scalar_lea.vmem [#allocation11], %s387
          %390 = vsyncadd %s385, 0
          %s391 = smul.addr %s35, 16
          %s392 = smul.addr %s391, 8
          %s393 = scalar_lea.hbm %s3, %s392
          %s394 = sshll.u32 %s393, 4
          %s395 = int_to_ptr.hbm [resolvable:$true] %s394
          %s396 = sshll.u32 %s388, 4
          %s397 = int_to_ptr.vmem [resolvable:$true] %s396
          %402 = dma.hbm_to_vmem [thread:$0]  %s395, 2048, %s397, %s385, 128, 128, 8
        $region40: #{tpu_custom_call.1} parent=35 // pred_fallthru
          _
        // Predicated region
        $region41: #{tpu_custom_call.1} parent=35 // pred_check
          %p403 = pneg %p163
        $region42: #{tpu_custom_call.1} parent=35 // pred_check_branch
          %405 = sbr.rel (%p403) target = $region44
        $region43: #{tpu_custom_call.1} parent=35 // pred_region
          %s406 = sand.u32 %s28, 1
          %s407 = scalar_lea.sflag [#allocation12], %s406
          %s408 = sand.u32 %s153, 1
          %s409 = smul.addr %s408, 128
          %s410 = scalar_lea.vmem [#allocation13], %s409
          %412 = vsyncadd %s407, 0
          %s413 = smul.addr %s35, 16
          %s414 = smul.addr %s413, 8
          %s415 = scalar_lea.hbm %s4, %s414
          %s416 = sshll.u32 %s415, 4
          %s417 = int_to_ptr.hbm [resolvable:$true] %s416
          %s418 = sshll.u32 %s410, 4
          %s419 = int_to_ptr.vmem [resolvable:$true] %s418
          %424 = dma.hbm_to_vmem [thread:$0]  %s417, 2048, %s419, %s407, 128, 128, 8
        $region44: #{tpu_custom_call.1} parent=35 // pred_fallthru
          _
        // Predicated region
        $region45: #{tpu_custom_call.1} parent=35 // pred_check
          %p425 = pneg %p189
        $region46: #{tpu_custom_call.1} parent=35 // pred_check_branch
          %427 = sbr.rel (%p425) target = $region48
        $region47: #{tpu_custom_call.1} parent=35 // pred_region
          %p428 = scmp.lt.s32.totalorder %s35, 1
          %s429 = scalar_select %p428, %s35, 1
          %s430 = scalar_lea.vmem %s5, %s429
        $region48: #{tpu_custom_call.1} parent=35 // pred_fallthru
          _
      $region36: #{tpu_custom_call.1} parent=5 // pred_fallthru
        _
      %p431 = scmp.le.s32.totalorder 1, %s28
      %p432 = scmp.lt.s32.totalorder %s28, 3
      %p433 = pnand %p431, %p432
      %p434 = pneg %p433
      // Predicated region
      $region49: #{tpu_custom_call.1} parent=5 // pred_check
        _
      $region50: #{tpu_custom_call.1} parent=5 // pred_check_branch
        %436 = sbr.rel (%p433) target = $region52
      $region51: #{tpu_custom_call.1} parent=5 // pred_region
        %s437 = ssub.s32 %s28, 1
        // Predicated region
        $region53: #{tpu_custom_call.1} parent=51 // pred_check
          %p438 = pneg %p68
        $region54: #{tpu_custom_call.1} parent=51 // pred_check_branch
          %440 = sbr.rel (%p438) target = $region56
        $region55: #{tpu_custom_call.1} parent=51 // pred_region
          %442 = dma.done [#allocation6], 4096
        $region56: #{tpu_custom_call.1} parent=51 // pred_fallthru
          _
        // Predicated region
        $region57: #{tpu_custom_call.1} parent=51 // pred_check
          %p443 = pneg %p89
        $region58: #{tpu_custom_call.1} parent=51 // pred_check_branch
          %445 = sbr.rel (%p443) target = $region60
        $region59: #{tpu_custom_call.1} parent=51 // pred_region
          %447 = dma.done [#allocation9], 2048
        $region60: #{tpu_custom_call.1} parent=51 // pred_fallthru
          _
        // Predicated region
        $region61: #{tpu_custom_call.1} parent=51 // pred_check
          %p448 = pneg %p117
        $region62: #{tpu_custom_call.1} parent=51 // pred_check_branch
          %450 = sbr.rel (%p448) target = $region64
        $region63: #{tpu_custom_call.1} parent=51 // pred_region
          %452 = dma.done [#allocation9], 4096
        $region64: #{tpu_custom_call.1} parent=51 // pred_fallthru
          _
        %s453 = sand.u32 %s33, 1
        %s454 = scalar_lea.sflag [#allocation12], %s453
        %s455 = sand.u32 %s130, 1
        %s456 = smul.addr %s455, 128
        %s457 = scalar_lea.vmem [#allocation11], %s456
        // Predicated region
        $region65: #{tpu_custom_call.1} parent=51 // pred_check
          %p458 = pneg %p143
        $region66: #{tpu_custom_call.1} parent=51 // pred_check_branch
          %460 = sbr.rel (%p458) target = $region68
        $region67: #{tpu_custom_call.1} parent=51 // pred_region
          %462 = dma.done %s454, 2048
        $region68: #{tpu_custom_call.1} parent=51 // pred_fallthru
          _
        %s463 = sand.u32 %s33, 1
        %s464 = scalar_lea.sflag [#allocation12], %s463
        %s465 = sand.u32 %s156, 1
        %s466 = smul.addr %s465, 128
        %s467 = scalar_lea.vmem [#allocation13], %s466
        // Predicated region
        $region69: #{tpu_custom_call.1} parent=51 // pred_check
          %p468 = pneg %p169
        $region70: #{tpu_custom_call.1} parent=51 // pred_check_branch
          %470 = sbr.rel (%p468) target = $region72
        $region71: #{tpu_custom_call.1} parent=51 // pred_region
          %472 = dma.done %s464, 2048
        $region72: #{tpu_custom_call.1} parent=51 // pred_fallthru
          _
        // Predicated region
        $region73: #{tpu_custom_call.1} parent=51 // pred_check
          %p473 = pneg %p216
        $region74: #{tpu_custom_call.1} parent=51 // pred_check_branch
          %475 = sbr.rel (%p473) target = $region76
        $region75: #{tpu_custom_call.1} parent=51 // pred_region
          %477 = dma.done [#allocation15], 2048
        $region76: #{tpu_custom_call.1} parent=51 // pred_fallthru
          _
        %p478 = pneg %p68
        %p479 = pneg %p65
        %p480 = pneg %p89
        %p481 = pneg %p86
        %p482 = pneg %p117
        %p483 = pneg %p114
        %s484 = sand.u32 %s33, 1
        %s485 = scalar_lea.sflag [#allocation12], %s484
        %s486 = sand.u32 %s130, 1
        %s487 = smul.addr %s486, 128
        %s488 = scalar_lea.vmem [#allocation11], %s487
        %p489 = pneg %p143
        %p490 = pneg %p140
        %s491 = sand.u32 %s33, 1
        %s492 = scalar_lea.sflag [#allocation12], %s491
        %s493 = sand.u32 %s156, 1
        %s494 = smul.addr %s493, 128
        %s495 = scalar_lea.vmem [#allocation13], %s494
        %p496 = pneg %p169
        %p497 = pneg %p166
        %p498 = scmp.lt.s32.totalorder %s38, 1
        %s499 = scalar_select %p498, %s38, 1
        %s500 = scalar_lea.vmem %s5, %s499
        %p501 = pneg %p195
        %p502 = pneg %p192
        %p503 = pneg %p216
        %p504 = pneg %p213
        %p505 = pneg %p237
        %p506 = pneg %p234
        %p507 = pneg %p267
        %p508 = pneg %p264
        %s509 = sand.u32 %s254, 1
        %s510 = scalar_lea.sflag [#allocation7], %s509
        %s511 = sand.u32 %s254, 1
        %s512 = smul.addr %s511, 256
        %s513 = scalar_lea.vmem [#allocation16], %s512
        %p514 = pneg %p297
        %p515 = pneg %p294
        %s516 = sand.u32 %s284, 1
        %s517 = scalar_lea.sflag [#allocation18], %s516
        %s518 = sand.u32 %s284, 1
        %s519 = smul.addr %s518, 256
        %s520 = scalar_lea.vmem [#allocation17], %s519
        %s521 = smul.u32 32, %s39
        %s522 = smul.u32 2, %s40
        %p523 = scmp.lt.s32.totalorder %s38, 1
        %s524 = scalar_select %p523, %s38, 1
        %s525 = scalar_lea.vmem %s5, %s524
        %p526 = scmp.eq.s32.totalorder %s38, 1
        %s527 = scalar_select %p526, %s39, 0
        %s528 = smul.u32 32, %s527
        %p529 = scmp.eq.s32.totalorder %s38, 1
        %s530 = scalar_select %p529, %s39, 0
        %s531 = smul.u32 32, %s530
        %p532 = scmp.eq.s32.totalorder %s38, 0
        %p533 = scmp.eq.s32.totalorder %s39, 0
        %p534 = pnand %p532, %p533
        %p535 = pneg %p534
        %p536 = scmp.eq.s32.totalorder %s40, 0
        %p537 = pnand %p535, %p536
        %p538 = pneg %p537
        // Predicated region
        $region77: #{tpu_custom_call.1} parent=51 // pred_check
          _
        $region78: #{tpu_custom_call.1} parent=51 // pred_check_branch
          %540 = sbr.rel (%p537) target = $region80
        $region79: #{tpu_custom_call.1} parent=51 // pred_region
          %v541 = vld [vmem:[#allocation5] sm:$0xff]
          %v542 = vld [vmem:[#allocation5 + $0x8] sm:$0xff]
          %v543 = vld [vmem:[#allocation5 + $0x10] sm:$0xff]
          %v544 = vld [vmem:[#allocation5 + $0x18] sm:$0xff]
          %v545 = vld [vmem:[#allocation5 + $0x20] sm:$0xff]
          %v546 = vld [vmem:[#allocation5 + $0x28] sm:$0xff]
          %v547 = vld [vmem:[#allocation5 + $0x30] sm:$0xff]
          %v548 = vld [vmem:[#allocation5 + $0x38] sm:$0xff]
          %v549 = vld [vmem:[#allocation5 + $0x40] sm:$0xff]
          %v550 = vld [vmem:[#allocation5 + $0x48] sm:$0xff]
          %v551 = vld [vmem:[#allocation5 + $0x50] sm:$0xff]
          %v552 = vld [vmem:[#allocation5 + $0x58] sm:$0xff]
          %v553 = vld [vmem:[#allocation5 + $0x60] sm:$0xff]
          %v554 = vld [vmem:[#allocation5 + $0x68] sm:$0xff]
          %v555 = vld [vmem:[#allocation5 + $0x70] sm:$0xff]
          %v556 = vld [vmem:[#allocation5 + $0x78] sm:$0xff]
          %v557 = vld [vmem:[#allocation5 + $0x80] sm:$0xff]
          %v558 = vld [vmem:[#allocation5 + $0x88] sm:$0xff]
          %v559 = vld [vmem:[#allocation5 + $0x90] sm:$0xff]
          %v560 = vld [vmem:[#allocation5 + $0x98] sm:$0xff]
          %v561 = vld [vmem:[#allocation5 + $0xa0] sm:$0xff]
          %v562 = vld [vmem:[#allocation5 + $0xa8] sm:$0xff]
          %v563 = vld [vmem:[#allocation5 + $0xb0] sm:$0xff]
          %v564 = vld [vmem:[#allocation5 + $0xb8] sm:$0xff]
          %v565 = vld [vmem:[#allocation5 + $0xc0] sm:$0xff]
          %v566 = vld [vmem:[#allocation5 + $0xc8] sm:$0xff]
          %v567 = vld [vmem:[#allocation5 + $0xd0] sm:$0xff]
          %v568 = vld [vmem:[#allocation5 + $0xd8] sm:$0xff]
          %v569 = vld [vmem:[#allocation5 + $0xe0] sm:$0xff]
          %v570 = vld [vmem:[#allocation5 + $0xe8] sm:$0xff]
          %v571 = vld [vmem:[#allocation5 + $0xf0] sm:$0xff]
          %v572 = vld [vmem:[#allocation5 + $0xf8] sm:$0xff]
          %v573 = vld [vmem:[#allocation8] sm:$0xff]
          %v574 = vld [vmem:[#allocation8 + $0x8] sm:$0xff]
          %v575 = vld [vmem:[#allocation8 + $0x10] sm:$0xff]
          %v576 = vld [vmem:[#allocation8 + $0x18] sm:$0xff]
          %v577 = vld [vmem:[#allocation8 + $0x20] sm:$0xff]
          %v578 = vld [vmem:[#allocation8 + $0x28] sm:$0xff]
          %v579 = vld [vmem:[#allocation8 + $0x30] sm:$0xff]
          %v580 = vld [vmem:[#allocation8 + $0x38] sm:$0xff]
          %v581 = vld [vmem:[#allocation8 + $0x40] sm:$0xff]
          %v582 = vld [vmem:[#allocation8 + $0x48] sm:$0xff]
          %v583 = vld [vmem:[#allocation8 + $0x50] sm:$0xff]
          %v584 = vld [vmem:[#allocation8 + $0x58] sm:$0xff]
          %v585 = vld [vmem:[#allocation8 + $0x60] sm:$0xff]
          %v586 = vld [vmem:[#allocation8 + $0x68] sm:$0xff]
          %v587 = vld [vmem:[#allocation8 + $0x70] sm:$0xff]
          %v588 = vld [vmem:[#allocation8 + $0x78] sm:$0xff]
          %589 = vmatpush.msra.mxu0 %v588
          %590 = vmatpush.msra.mxu0 %v587
          %591 = vmatpush.msra.mxu0 %v586
          %592 = vmatpush.msra.mxu0 %v585
          %593 = vmatpush.msra.mxu0 %v584
          %594 = vmatpush.msra.mxu0 %v583
          %595 = vmatpush.msra.mxu0 %v582
          %596 = vmatpush.msra.mxu0 %v581
          %597 = vmatpush.msra.mxu0 %v580
          %598 = vmatpush.msra.mxu0 %v579
          %599 = vmatpush.msra.mxu0 %v578
          %600 = vmatpush.msra.mxu0 %v577
          %601 = vmatpush.msra.mxu0 %v576
          %602 = vmatpush.msra.mxu0 %v575
          %603 = vmatpush.msra.mxu0 %v574
          %604 = vmatpush.msra.mxu0 %v573
          %605 = vmatmul.f32.gmra.mxu0 %v541
          %v606 = vpop.f32.mrf.mxu0
          %v607 = vadd.f32 0.0, %v606
          %608 = vmatmul.f32.gmra.mxu0 %v542
          %v609 = vpop.f32.mrf.mxu0
          %v610 = vadd.f32 0.0, %v609
          %611 = vmatmul.f32.gmra.mxu0 %v543
          %v612 = vpop.f32.mrf.mxu0
          %v613 = vadd.f32 0.0, %v612
          %614 = vmatmul.f32.gmra.mxu0 %v544
          %v615 = vpop.f32.mrf.mxu0
          %v616 = vadd.f32 0.0, %v615
          %617 = vmatmul.f32.gmra.mxu0 %v545
          %v618 = vpop.f32.mrf.mxu0
          %v619 = vadd.f32 0.0, %v618
          %620 = vmatmul.f32.gmra.mxu0 %v546
          %v621 = vpop.f32.mrf.mxu0
          %v622 = vadd.f32 0.0, %v621
          %623 = vmatmul.f32.gmra.mxu0 %v547
          %v624 = vpop.f32.mrf.mxu0
          %v625 = vadd.f32 0.0, %v624
          %626 = vmatmul.f32.gmra.mxu0 %v548
          %v627 = vpop.f32.mrf.mxu0
          %v628 = vadd.f32 0.0, %v627
          %629 = vmatmul.f32.gmra.mxu0 %v549
          %v630 = vpop.f32.mrf.mxu0
          %v631 = vadd.f32 0.0, %v630
          %632 = vmatmul.f32.gmra.mxu0 %v550
          %v633 = vpop.f32.mrf.mxu0
          %v634 = vadd.f32 0.0, %v633
          %635 = vmatmul.f32.gmra.mxu0 %v551
          %v636 = vpop.f32.mrf.mxu0
          %v637 = vadd.f32 0.0, %v636
          %638 = vmatmul.f32.gmra.mxu0 %v552
          %v639 = vpop.f32.mrf.mxu0
          %v640 = vadd.f32 0.0, %v639
          %641 = vmatmul.f32.gmra.mxu0 %v553
          %v642 = vpop.f32.mrf.mxu0
          %v643 = vadd.f32 0.0, %v642
          %644 = vmatmul.f32.gmra.mxu0 %v554
          %v645 = vpop.f32.mrf.mxu0
          %v646 = vadd.f32 0.0, %v645
          %647 = vmatmul.f32.gmra.mxu0 %v555
          %v648 = vpop.f32.mrf.mxu0
          %v649 = vadd.f32 0.0, %v648
          %650 = vmatmul.f32.gmra.mxu0 %v556
          %v651 = vpop.f32.mrf.mxu0
          %v652 = vadd.f32 0.0, %v651
          %653 = vmatmul.f32.gmra.mxu0 %v557
          %v654 = vpop.f32.mrf.mxu0
          %v655 = vadd.f32 0.0, %v654
          %656 = vmatmul.f32.gmra.mxu0 %v558
          %v657 = vpop.f32.mrf.mxu0
          %v658 = vadd.f32 0.0, %v657
          %659 = vmatmul.f32.gmra.mxu0 %v559
          %v660 = vpop.f32.mrf.mxu0
          %v661 = vadd.f32 0.0, %v660
          %662 = vmatmul.f32.gmra.mxu0 %v560
          %v663 = vpop.f32.mrf.mxu0
          %v664 = vadd.f32 0.0, %v663
          %665 = vmatmul.f32.gmra.mxu0 %v561
          %v666 = vpop.f32.mrf.mxu0
          %v667 = vadd.f32 0.0, %v666
          %668 = vmatmul.f32.gmra.mxu0 %v562
          %v669 = vpop.f32.mrf.mxu0
          %v670 = vadd.f32 0.0, %v669
          %671 = vmatmul.f32.gmra.mxu0 %v563
          %v672 = vpop.f32.mrf.mxu0
          %v673 = vadd.f32 0.0, %v672
          %674 = vmatmul.f32.gmra.mxu0 %v564
          %v675 = vpop.f32.mrf.mxu0
          %v676 = vadd.f32 0.0, %v675
          %677 = vmatmul.f32.gmra.mxu0 %v565
          %v678 = vpop.f32.mrf.mxu0
          %v679 = vadd.f32 0.0, %v678
          %680 = vmatmul.f32.gmra.mxu0 %v566
          %v681 = vpop.f32.mrf.mxu0
          %v682 = vadd.f32 0.0, %v681
          %683 = vmatmul.f32.gmra.mxu0 %v567
          %v684 = vpop.f32.mrf.mxu0
          %v685 = vadd.f32 0.0, %v684
          %686 = vmatmul.f32.gmra.mxu0 %v568
          %v687 = vpop.f32.mrf.mxu0
          %v688 = vadd.f32 0.0, %v687
          %689 = vmatmul.f32.gmra.mxu0 %v569
          %v690 = vpop.f32.mrf.mxu0
          %v691 = vadd.f32 0.0, %v690
          %692 = vmatmul.f32.gmra.mxu0 %v570
          %v693 = vpop.f32.mrf.mxu0
          %v694 = vadd.f32 0.0, %v693
          %695 = vmatmul.f32.gmra.mxu0 %v571
          %v696 = vpop.f32.mrf.mxu0
          %v697 = vadd.f32 0.0, %v696
          %698 = vmatmul.f32.gmra.mxu0 %v572
          %v699 = vpop.f32.mrf.mxu0
          %v700 = vadd.f32 0.0, %v699
          %701 = vdwg.mxu0
          %702 = vst [vmem:[#allocation2] sm:$0xff] %v607
          %703 = vst [vmem:[#allocation2 + $0x8] sm:$0xff] %v610
          %704 = vst [vmem:[#allocation2 + $0x10] sm:$0xff] %v613
          %705 = vst [vmem:[#allocation2 + $0x18] sm:$0xff] %v616
          %706 = vst [vmem:[#allocation2 + $0x20] sm:$0xff] %v619
          %707 = vst [vmem:[#allocation2 + $0x28] sm:$0xff] %v622
          %708 = vst [vmem:[#allocation2 + $0x30] sm:$0xff] %v625
          %709 = vst [vmem:[#allocation2 + $0x38] sm:$0xff] %v628
          %710 = vst [vmem:[#allocation2 + $0x40] sm:$0xff] %v631
          %711 = vst [vmem:[#allocation2 + $0x48] sm:$0xff] %v634
          %712 = vst [vmem:[#allocation2 + $0x50] sm:$0xff] %v637
          %713 = vst [vmem:[#allocation2 + $0x58] sm:$0xff] %v640
          %714 = vst [vmem:[#allocation2 + $0x60] sm:$0xff] %v643
          %715 = vst [vmem:[#allocation2 + $0x68] sm:$0xff] %v646
          %716 = vst [vmem:[#allocation2 + $0x70] sm:$0xff] %v649
          %717 = vst [vmem:[#allocation2 + $0x78] sm:$0xff] %v652
          %718 = vst [vmem:[#allocation2 + $0x80] sm:$0xff] %v655
          %719 = vst [vmem:[#allocation2 + $0x88] sm:$0xff] %v658
          %720 = vst [vmem:[#allocation2 + $0x90] sm:$0xff] %v661
          %721 = vst [vmem:[#allocation2 + $0x98] sm:$0xff] %v664
          %722 = vst [vmem:[#allocation2 + $0xa0] sm:$0xff] %v667
          %723 = vst [vmem:[#allocation2 + $0xa8] sm:$0xff] %v670
          %724 = vst [vmem:[#allocation2 + $0xb0] sm:$0xff] %v673
          %725 = vst [vmem:[#allocation2 + $0xb8] sm:$0xff] %v676
          %726 = vst [vmem:[#allocation2 + $0xc0] sm:$0xff] %v679
          %727 = vst [vmem:[#allocation2 + $0xc8] sm:$0xff] %v682
          %728 = vst [vmem:[#allocation2 + $0xd0] sm:$0xff] %v685
          %729 = vst [vmem:[#allocation2 + $0xd8] sm:$0xff] %v688
          %730 = vst [vmem:[#allocation2 + $0xe0] sm:$0xff] %v691
          %731 = vst [vmem:[#allocation2 + $0xe8] sm:$0xff] %v694
          %732 = vst [vmem:[#allocation2 + $0xf0] sm:$0xff] %v697
          %733 = vst [vmem:[#allocation2 + $0xf8] sm:$0xff] %v700
        $region80: #{tpu_custom_call.1} parent=51 // pred_fallthru
          _
        %p734 = pnand %p533, %p536
        %p735 = pneg %p734
        // Predicated region
        $region81: #{tpu_custom_call.1} parent=51 // pred_check
          _
        $region82: #{tpu_custom_call.1} parent=51 // pred_check_branch
          %737 = sbr.rel (%p734) target = $region84
        $region83: #{tpu_custom_call.1} parent=51 // pred_region
          %v738 = vld [vmem:[#allocation2] sm:$0xff]
          %v739 = vld [vmem:[#allocation2 + $0x8] sm:$0xff]
          %v740 = vld [vmem:[#allocation2 + $0x10] sm:$0xff]
          %v741 = vld [vmem:[#allocation2 + $0x18] sm:$0xff]
          %v742 = vld [vmem:[#allocation2 + $0x20] sm:$0xff]
          %v743 = vld [vmem:[#allocation2 + $0x28] sm:$0xff]
          %v744 = vld [vmem:[#allocation2 + $0x30] sm:$0xff]
          %v745 = vld [vmem:[#allocation2 + $0x38] sm:$0xff]
          %v746 = vld [vmem:[#allocation2 + $0x40] sm:$0xff]
          %v747 = vld [vmem:[#allocation2 + $0x48] sm:$0xff]
          %v748 = vld [vmem:[#allocation2 + $0x50] sm:$0xff]
          %v749 = vld [vmem:[#allocation2 + $0x58] sm:$0xff]
          %v750 = vld [vmem:[#allocation2 + $0x60] sm:$0xff]
          %v751 = vld [vmem:[#allocation2 + $0x68] sm:$0xff]
          %v752 = vld [vmem:[#allocation2 + $0x70] sm:$0xff]
          %v753 = vld [vmem:[#allocation2 + $0x78] sm:$0xff]
          %v754 = vld [vmem:[#allocation2 + $0x80] sm:$0xff]
          %v755 = vld [vmem:[#allocation2 + $0x88] sm:$0xff]
          %v756 = vld [vmem:[#allocation2 + $0x90] sm:$0xff]
          %v757 = vld [vmem:[#allocation2 + $0x98] sm:$0xff]
          %v758 = vld [vmem:[#allocation2 + $0xa0] sm:$0xff]
          %v759 = vld [vmem:[#allocation2 + $0xa8] sm:$0xff]
          %v760 = vld [vmem:[#allocation2 + $0xb0] sm:$0xff]
          %v761 = vld [vmem:[#allocation2 + $0xb8] sm:$0xff]
          %v762 = vld [vmem:[#allocation2 + $0xc0] sm:$0xff]
          %v763 = vld [vmem:[#allocation2 + $0xc8] sm:$0xff]
          %v764 = vld [vmem:[#allocation2 + $0xd0] sm:$0xff]
          %v765 = vld [vmem:[#allocation2 + $0xd8] sm:$0xff]
          %v766 = vld [vmem:[#allocation2 + $0xe0] sm:$0xff]
          %v767 = vld [vmem:[#allocation2 + $0xe8] sm:$0xff]
          %v768 = vld [vmem:[#allocation2 + $0xf0] sm:$0xff]
          %v769 = vld [vmem:[#allocation2 + $0xf8] sm:$0xff]
          %v770 = vld [vmem:[%s457] sm:$0xff]
          %v771 = vld [vmem:[%s457 + $0x8] sm:$0xff]
          %v772 = vld [vmem:[%s457 + $0x10] sm:$0xff]
          %v773 = vld [vmem:[%s457 + $0x18] sm:$0xff]
          %v774 = vld [vmem:[%s457 + $0x20] sm:$0xff]
          %v775 = vld [vmem:[%s457 + $0x28] sm:$0xff]
          %v776 = vld [vmem:[%s457 + $0x30] sm:$0xff]
          %v777 = vld [vmem:[%s457 + $0x38] sm:$0xff]
          %v778 = vld [vmem:[%s457 + $0x40] sm:$0xff]
          %v779 = vld [vmem:[%s457 + $0x48] sm:$0xff]
          %v780 = vld [vmem:[%s457 + $0x50] sm:$0xff]
          %v781 = vld [vmem:[%s457 + $0x58] sm:$0xff]
          %v782 = vld [vmem:[%s457 + $0x60] sm:$0xff]
          %v783 = vld [vmem:[%s457 + $0x68] sm:$0xff]
          %v784 = vld [vmem:[%s457 + $0x70] sm:$0xff]
          %v785 = vld [vmem:[%s457 + $0x78] sm:$0xff]
          %786 = vmatpush.msra.mxu0 %v785
          %787 = vmatpush.msra.mxu0 %v784
          %788 = vmatpush.msra.mxu0 %v783
          %789 = vmatpush.msra.mxu0 %v782
          %790 = vmatpush.msra.mxu0 %v781
          %791 = vmatpush.msra.mxu0 %v780
          %792 = vmatpush.msra.mxu0 %v779
          %793 = vmatpush.msra.mxu0 %v778
          %794 = vmatpush.msra.mxu0 %v777
          %795 = vmatpush.msra.mxu0 %v776
          %796 = vmatpush.msra.mxu0 %v775
          %797 = vmatpush.msra.mxu0 %v774
          %798 = vmatpush.msra.mxu0 %v773
          %799 = vmatpush.msra.mxu0 %v772
          %800 = vmatpush.msra.mxu0 %v771
          %801 = vmatpush.msra.mxu0 %v770
          %802 = vmatmul.f32.gmra.mxu0 %v738
          %v803 = vpop.f32.mrf.mxu0
          %v804 = vadd.f32 0.0, %v803
          %805 = vmatmul.f32.gmra.mxu0 %v739
          %v806 = vpop.f32.mrf.mxu0
          %v807 = vadd.f32 0.0, %v806
          %808 = vmatmul.f32.gmra.mxu0 %v740
          %v809 = vpop.f32.mrf.mxu0
          %v810 = vadd.f32 0.0, %v809
          %811 = vmatmul.f32.gmra.mxu0 %v741
          %v812 = vpop.f32.mrf.mxu0
          %v813 = vadd.f32 0.0, %v812
          %814 = vmatmul.f32.gmra.mxu0 %v742
          %v815 = vpop.f32.mrf.mxu0
          %v816 = vadd.f32 0.0, %v815
          %817 = vmatmul.f32.gmra.mxu0 %v743
          %v818 = vpop.f32.mrf.mxu0
          %v819 = vadd.f32 0.0, %v818
          %820 = vmatmul.f32.gmra.mxu0 %v744
          %v821 = vpop.f32.mrf.mxu0
          %v822 = vadd.f32 0.0, %v821
          %823 = vmatmul.f32.gmra.mxu0 %v745
          %v824 = vpop.f32.mrf.mxu0
          %v825 = vadd.f32 0.0, %v824
          %826 = vmatmul.f32.gmra.mxu0 %v746
          %v827 = vpop.f32.mrf.mxu0
          %v828 = vadd.f32 0.0, %v827
          %829 = vmatmul.f32.gmra.mxu0 %v747
          %v830 = vpop.f32.mrf.mxu0
          %v831 = vadd.f32 0.0, %v830
          %832 = vmatmul.f32.gmra.mxu0 %v748
          %v833 = vpop.f32.mrf.mxu0
          %v834 = vadd.f32 0.0, %v833
          %835 = vmatmul.f32.gmra.mxu0 %v749
          %v836 = vpop.f32.mrf.mxu0
          %v837 = vadd.f32 0.0, %v836
          %838 = vmatmul.f32.gmra.mxu0 %v750
          %v839 = vpop.f32.mrf.mxu0
          %v840 = vadd.f32 0.0, %v839
          %841 = vmatmul.f32.gmra.mxu0 %v751
          %v842 = vpop.f32.mrf.mxu0
          %v843 = vadd.f32 0.0, %v842
          %844 = vmatmul.f32.gmra.mxu0 %v752
          %v845 = vpop.f32.mrf.mxu0
          %v846 = vadd.f32 0.0, %v845
          %847 = vmatmul.f32.gmra.mxu0 %v753
          %v848 = vpop.f32.mrf.mxu0
          %v849 = vadd.f32 0.0, %v848
          %850 = vmatmul.f32.gmra.mxu0 %v754
          %v851 = vpop.f32.mrf.mxu0
          %v852 = vadd.f32 0.0, %v851
          %853 = vmatmul.f32.gmra.mxu0 %v755
          %v854 = vpop.f32.mrf.mxu0
          %v855 = vadd.f32 0.0, %v854
          %856 = vmatmul.f32.gmra.mxu0 %v756
          %v857 = vpop.f32.mrf.mxu0
          %v858 = vadd.f32 0.0, %v857
          %859 = vmatmul.f32.gmra.mxu0 %v757
          %v860 = vpop.f32.mrf.mxu0
          %v861 = vadd.f32 0.0, %v860
          %862 = vmatmul.f32.gmra.mxu0 %v758
          %v863 = vpop.f32.mrf.mxu0
          %v864 = vadd.f32 0.0, %v863
          %865 = vmatmul.f32.gmra.mxu0 %v759
          %v866 = vpop.f32.mrf.mxu0
          %v867 = vadd.f32 0.0, %v866
          %868 = vmatmul.f32.gmra.mxu0 %v760
          %v869 = vpop.f32.mrf.mxu0
          %v870 = vadd.f32 0.0, %v869
          %871 = vmatmul.f32.gmra.mxu0 %v761
          %v872 = vpop.f32.mrf.mxu0
          %v873 = vadd.f32 0.0, %v872
          %874 = vmatmul.f32.gmra.mxu0 %v762
          %v875 = vpop.f32.mrf.mxu0
          %v876 = vadd.f32 0.0, %v875
          %877 = vmatmul.f32.gmra.mxu0 %v763
          %v878 = vpop.f32.mrf.mxu0
          %v879 = vadd.f32 0.0, %v878
          %880 = vmatmul.f32.gmra.mxu0 %v764
          %v881 = vpop.f32.mrf.mxu0
          %v882 = vadd.f32 0.0, %v881
          %883 = vmatmul.f32.gmra.mxu0 %v765
          %v884 = vpop.f32.mrf.mxu0
          %v885 = vadd.f32 0.0, %v884
          %886 = vmatmul.f32.gmra.mxu0 %v766
          %v887 = vpop.f32.mrf.mxu0
          %v888 = vadd.f32 0.0, %v887
          %889 = vmatmul.f32.gmra.mxu0 %v767
          %v890 = vpop.f32.mrf.mxu0
          %v891 = vadd.f32 0.0, %v890
          %892 = vmatmul.f32.gmra.mxu0 %v768
          %v893 = vpop.f32.mrf.mxu0
          %v894 = vadd.f32 0.0, %v893
          %895 = vmatmul.f32.gmra.mxu0 %v769
          %v896 = vpop.f32.mrf.mxu0
          %v897 = vadd.f32 0.0, %v896
          %898 = vdwg.mxu0
          %v899 = vpack.c.bf16 %v804, %v804
          %v900 = vpack.c.bf16 %v807, %v807
          %v901 = vpack.c.bf16 %v810, %v810
          %v902 = vpack.c.bf16 %v813, %v813
          %v903 = vpack.c.bf16 %v816, %v816
          %v904 = vpack.c.bf16 %v819, %v819
          %v905 = vpack.c.bf16 %v822, %v822
          %v906 = vpack.c.bf16 %v825, %v825
          %v907 = vpack.c.bf16 %v828, %v828
          %v908 = vpack.c.bf16 %v831, %v831
          %v909 = vpack.c.bf16 %v834, %v834
          %v910 = vpack.c.bf16 %v837, %v837
          %v911 = vpack.c.bf16 %v840, %v840
          %v912 = vpack.c.bf16 %v843, %v843
          %v913 = vpack.c.bf16 %v846, %v846
          %v914 = vpack.c.bf16 %v849, %v849
          %v915 = vpack.c.bf16 %v852, %v852
          %v916 = vpack.c.bf16 %v855, %v855
          %v917 = vpack.c.bf16 %v858, %v858
          %v918 = vpack.c.bf16 %v861, %v861
          %v919 = vpack.c.bf16 %v864, %v864
          %v920 = vpack.c.bf16 %v867, %v867
          %v921 = vpack.c.bf16 %v870, %v870
          %v922 = vpack.c.bf16 %v873, %v873
          %v923 = vpack.c.bf16 %v876, %v876
          %v924 = vpack.c.bf16 %v879, %v879
          %v925 = vpack.c.bf16 %v882, %v882
          %v926 = vpack.c.bf16 %v885, %v885
          %v927 = vpack.c.bf16 %v888, %v888
          %v928 = vpack.c.bf16 %v891, %v891
          %v929 = vpack.c.bf16 %v894, %v894
          %v930 = vpack.c.bf16 %v897, %v897
          %931 = vst [vmem:[#allocation3] sm:$0xf] %v899
          %932 = vst [vmem:[#allocation3 + $0x4] sm:$0xf] %v900
          %933 = vst [vmem:[#allocation3 + $0x8] sm:$0xf] %v901
          %934 = vst [vmem:[#allocation3 + $0xc] sm:$0xf] %v902
          %935 = vst [vmem:[#allocation3 + $0x10] sm:$0xf] %v903
          %936 = vst [vmem:[#allocation3 + $0x14] sm:$0xf] %v904
          %937 = vst [vmem:[#allocation3 + $0x18] sm:$0xf] %v905
          %938 = vst [vmem:[#allocation3 + $0x1c] sm:$0xf] %v906
          %939 = vst [vmem:[#allocation3 + $0x20] sm:$0xf] %v907
          %940 = vst [vmem:[#allocation3 + $0x24] sm:$0xf] %v908
          %941 = vst [vmem:[#allocation3 + $0x28] sm:$0xf] %v909
          %942 = vst [vmem:[#allocation3 + $0x2c] sm:$0xf] %v910
          %943 = vst [vmem:[#allocation3 + $0x30] sm:$0xf] %v911
          %944 = vst [vmem:[#allocation3 + $0x34] sm:$0xf] %v912
          %945 = vst [vmem:[#allocation3 + $0x38] sm:$0xf] %v913
          %946 = vst [vmem:[#allocation3 + $0x3c] sm:$0xf] %v914
          %947 = vst [vmem:[#allocation3 + $0x40] sm:$0xf] %v915
          %948 = vst [vmem:[#allocation3 + $0x44] sm:$0xf] %v916
          %949 = vst [vmem:[#allocation3 + $0x48] sm:$0xf] %v917
          %950 = vst [vmem:[#allocation3 + $0x4c] sm:$0xf] %v918
          %951 = vst [vmem:[#allocation3 + $0x50] sm:$0xf] %v919
          %952 = vst [vmem:[#allocation3 + $0x54] sm:$0xf] %v920
          %953 = vst [vmem:[#allocation3 + $0x58] sm:$0xf] %v921
          %954 = vst [vmem:[#allocation3 + $0x5c] sm:$0xf] %v922
          %955 = vst [vmem:[#allocation3 + $0x60] sm:$0xf] %v923
          %956 = vst [vmem:[#allocation3 + $0x64] sm:$0xf] %v924
          %957 = vst [vmem:[#allocation3 + $0x68] sm:$0xf] %v925
          %958 = vst [vmem:[#allocation3 + $0x6c] sm:$0xf] %v926
          %959 = vst [vmem:[#allocation3 + $0x70] sm:$0xf] %v927
          %960 = vst [vmem:[#allocation3 + $0x74] sm:$0xf] %v928
          %961 = vst [vmem:[#allocation3 + $0x78] sm:$0xf] %v929
          %962 = vst [vmem:[#allocation3 + $0x7c] sm:$0xf] %v930
        $region84: #{tpu_custom_call.1} parent=51 // pred_fallthru
          _
        // Predicated region
        $region85: #{tpu_custom_call.1} parent=51 // pred_check
          %p963 = pneg %p536
        $region86: #{tpu_custom_call.1} parent=51 // pred_check_branch
          %965 = sbr.rel (%p963) target = $region88
        $region87: #{tpu_custom_call.1} parent=51 // pred_region
          %966 = vst [vmem:[#allocation4] sm:$0xff] 0.0
          %967 = vst [vmem:[#allocation4 + $0x8] sm:$0xff] 0.0
          %968 = vst [vmem:[#allocation4 + $0x10] sm:$0xff] 0.0
          %969 = vst [vmem:[#allocation4 + $0x18] sm:$0xff] 0.0
          %970 = vst [vmem:[#allocation4 + $0x20] sm:$0xff] 0.0
          %971 = vst [vmem:[#allocation4 + $0x28] sm:$0xff] 0.0
          %972 = vst [vmem:[#allocation4 + $0x30] sm:$0xff] 0.0
          %973 = vst [vmem:[#allocation4 + $0x38] sm:$0xff] 0.0
          %974 = vst [vmem:[#allocation4 + $0x40] sm:$0xff] 0.0
          %975 = vst [vmem:[#allocation4 + $0x48] sm:$0xff] 0.0
          %976 = vst [vmem:[#allocation4 + $0x50] sm:$0xff] 0.0
          %977 = vst [vmem:[#allocation4 + $0x58] sm:$0xff] 0.0
          %978 = vst [vmem:[#allocation4 + $0x60] sm:$0xff] 0.0
          %979 = vst [vmem:[#allocation4 + $0x68] sm:$0xff] 0.0
          %980 = vst [vmem:[#allocation4 + $0x70] sm:$0xff] 0.0
          %981 = vst [vmem:[#allocation4 + $0x78] sm:$0xff] 0.0
          %982 = vst [vmem:[#allocation4 + $0x80] sm:$0xff] 0.0
          %983 = vst [vmem:[#allocation4 + $0x88] sm:$0xff] 0.0
          %984 = vst [vmem:[#allocation4 + $0x90] sm:$0xff] 0.0
          %985 = vst [vmem:[#allocation4 + $0x98] sm:$0xff] 0.0
          %986 = vst [vmem:[#allocation4 + $0xa0] sm:$0xff] 0.0
          %987 = vst [vmem:[#allocation4 + $0xa8] sm:$0xff] 0.0
          %988 = vst [vmem:[#allocation4 + $0xb0] sm:$0xff] 0.0
          %989 = vst [vmem:[#allocation4 + $0xb8] sm:$0xff] 0.0
          %990 = vst [vmem:[#allocation4 + $0xc0] sm:$0xff] 0.0
          %991 = vst [vmem:[#allocation4 + $0xc8] sm:$0xff] 0.0
          %992 = vst [vmem:[#allocation4 + $0xd0] sm:$0xff] 0.0
          %993 = vst [vmem:[#allocation4 + $0xd8] sm:$0xff] 0.0
          %994 = vst [vmem:[#allocation4 + $0xe0] sm:$0xff] 0.0
          %995 = vst [vmem:[#allocation4 + $0xe8] sm:$0xff] 0.0
          %996 = vst [vmem:[#allocation4 + $0xf0] sm:$0xff] 0.0
          %997 = vst [vmem:[#allocation4 + $0xf8] sm:$0xff] 0.0
        $region88: #{tpu_custom_call.1} parent=51 // pred_fallthru
          _
        %s998 = smul.u32 %s40, 256
        %v999 = vld [vmem:[#allocation4] sm:$0xff]
        %v1000 = vld [vmem:[#allocation4 + $0x8] sm:$0xff]
        %v1001 = vld [vmem:[#allocation4 + $0x10] sm:$0xff]
        %v1002 = vld [vmem:[#allocation4 + $0x18] sm:$0xff]
        %v1003 = vld [vmem:[#allocation4 + $0x20] sm:$0xff]
        %v1004 = vld [vmem:[#allocation4 + $0x28] sm:$0xff]
        %v1005 = vld [vmem:[#allocation4 + $0x30] sm:$0xff]
        %v1006 = vld [vmem:[#allocation4 + $0x38] sm:$0xff]
        %v1007 = vld [vmem:[#allocation4 + $0x40] sm:$0xff]
        %v1008 = vld [vmem:[#allocation4 + $0x48] sm:$0xff]
        %v1009 = vld [vmem:[#allocation4 + $0x50] sm:$0xff]
        %v1010 = vld [vmem:[#allocation4 + $0x58] sm:$0xff]
        %v1011 = vld [vmem:[#allocation4 + $0x60] sm:$0xff]
        %v1012 = vld [vmem:[#allocation4 + $0x68] sm:$0xff]
        %v1013 = vld [vmem:[#allocation4 + $0x70] sm:$0xff]
        %v1014 = vld [vmem:[#allocation4 + $0x78] sm:$0xff]
        %v1015 = vld [vmem:[#allocation4 + $0x80] sm:$0xff]
        %v1016 = vld [vmem:[#allocation4 + $0x88] sm:$0xff]
        %v1017 = vld [vmem:[#allocation4 + $0x90] sm:$0xff]
        %v1018 = vld [vmem:[#allocation4 + $0x98] sm:$0xff]
        %v1019 = vld [vmem:[#allocation4 + $0xa0] sm:$0xff]
        %v1020 = vld [vmem:[#allocation4 + $0xa8] sm:$0xff]
        %v1021 = vld [vmem:[#allocation4 + $0xb0] sm:$0xff]
        %v1022 = vld [vmem:[#allocation4 + $0xb8] sm:$0xff]
        %v1023 = vld [vmem:[#allocation4 + $0xc0] sm:$0xff]
        %v1024 = vld [vmem:[#allocation4 + $0xc8] sm:$0xff]
        %v1025 = vld [vmem:[#allocation4 + $0xd0] sm:$0xff]
        %v1026 = vld [vmem:[#allocation4 + $0xd8] sm:$0xff]
        %v1027 = vld [vmem:[#allocation4 + $0xe0] sm:$0xff]
        %v1028 = vld [vmem:[#allocation4 + $0xe8] sm:$0xff]
        %v1029 = vld [vmem:[#allocation4 + $0xf0] sm:$0xff]
        %v1030 = vld [vmem:[#allocation4 + $0xf8] sm:$0xff]
        %v1031 = vld [vmem:[#allocation10] sm:$0xff]
        %v1032 = vld [vmem:[#allocation10 + $0x8] sm:$0xff]
        %v1033 = vld [vmem:[#allocation10 + $0x10] sm:$0xff]
        %v1034 = vld [vmem:[#allocation10 + $0x18] sm:$0xff]
        %v1035 = vld [vmem:[#allocation10 + $0x20] sm:$0xff]
        %v1036 = vld [vmem:[#allocation10 + $0x28] sm:$0xff]
        %v1037 = vld [vmem:[#allocation10 + $0x30] sm:$0xff]
        %v1038 = vld [vmem:[#allocation10 + $0x38] sm:$0xff]
        %v1039 = vld [vmem:[#allocation10 + $0x40] sm:$0xff]
        %v1040 = vld [vmem:[#allocation10 + $0x48] sm:$0xff]
        %v1041 = vld [vmem:[#allocation10 + $0x50] sm:$0xff]
        %v1042 = vld [vmem:[#allocation10 + $0x58] sm:$0xff]
        %v1043 = vld [vmem:[#allocation10 + $0x60] sm:$0xff]
        %v1044 = vld [vmem:[#allocation10 + $0x68] sm:$0xff]
        %v1045 = vld [vmem:[#allocation10 + $0x70] sm:$0xff]
        %v1046 = vld [vmem:[#allocation10 + $0x78] sm:$0xff]
        %v1047 = vld [vmem:[#allocation10 + $0x80] sm:$0xff]
        %v1048 = vld [vmem:[#allocation10 + $0x88] sm:$0xff]
        %v1049 = vld [vmem:[#allocation10 + $0x90] sm:$0xff]
        %v1050 = vld [vmem:[#allocation10 + $0x98] sm:$0xff]
        %v1051 = vld [vmem:[#allocation10 + $0xa0] sm:$0xff]
        %v1052 = vld [vmem:[#allocation10 + $0xa8] sm:$0xff]
        %v1053 = vld [vmem:[#allocation10 + $0xb0] sm:$0xff]
        %v1054 = vld [vmem:[#allocation10 + $0xb8] sm:$0xff]
        %v1055 = vld [vmem:[#allocation10 + $0xc0] sm:$0xff]
        %v1056 = vld [vmem:[#allocation10 + $0xc8] sm:$0xff]
        %v1057 = vld [vmem:[#allocation10 + $0xd0] sm:$0xff]
        %v1058 = vld [vmem:[#allocation10 + $0xd8] sm:$0xff]
        %v1059 = vld [vmem:[#allocation10 + $0xe0] sm:$0xff]
        %v1060 = vld [vmem:[#allocation10 + $0xe8] sm:$0xff]
        %v1061 = vld [vmem:[#allocation10 + $0xf0] sm:$0xff]
        %v1062 = vld [vmem:[#allocation10 + $0xf8] sm:$0xff]
        %s1063 = sshra.s32 %s998, 3
        %s1064 = sand.u32 %s998, 7
        %s1065 = smul.addr %s1063, 4
        %s1066 = scalar_lea.vmem [#allocation3], %s1065
        %v1067 = vld [vmem:[%s1066] sm:$0xf]
        %v1068 = vld [vmem:[%s1066 + $0x4] sm:$0xf]
        %v1069 = vld [vmem:[%s1066 + $0x8] sm:$0xf]
        %v1070 = vld [vmem:[%s1066 + $0xc] sm:$0xf]
        %v1071 = vld [vmem:[%s1066 + $0x10] sm:$0xf]
        %v1072 = vld [vmem:[%s1066 + $0x14] sm:$0xf]
        %v1073 = vld [vmem:[%s1066 + $0x18] sm:$0xf]
        %v1074 = vld [vmem:[%s1066 + $0x1c] sm:$0xf]
        %v1075 = vld [vmem:[%s1066 + $0x20] sm:$0xf]
        %v1076 = vld [vmem:[%s1066 + $0x24] sm:$0xf]
        %v1077 = vld [vmem:[%s1066 + $0x28] sm:$0xf]
        %v1078 = vld [vmem:[%s1066 + $0x2c] sm:$0xf]
        %v1079 = vld [vmem:[%s1066 + $0x30] sm:$0xf]
        %v1080 = vld [vmem:[%s1066 + $0x34] sm:$0xf]
        %v1081 = vld [vmem:[%s1066 + $0x38] sm:$0xf]
        %v1082 = vld [vmem:[%s1066 + $0x3c] sm:$0xf]
        %v1083 = vld [vmem:[%s1066 + $0x40] sm:$0xf]
        %v1084 = vld [vmem:[%s1066 + $0x44] sm:$0xf]
        %v1085 = vld [vmem:[%s1066 + $0x48] sm:$0xf]
        %v1086 = vld [vmem:[%s1066 + $0x4c] sm:$0xf]
        %v1087 = vld [vmem:[%s1066 + $0x50] sm:$0xf]
        %v1088 = vld [vmem:[%s1066 + $0x54] sm:$0xf]
        %v1089 = vld [vmem:[%s1066 + $0x58] sm:$0xf]
        %v1090 = vld [vmem:[%s1066 + $0x5c] sm:$0xf]
        %v1091 = vld [vmem:[%s1066 + $0x60] sm:$0xf]
        %v1092 = vld [vmem:[%s1066 + $0x64] sm:$0xf]
        %v1093 = vld [vmem:[%s1066 + $0x68] sm:$0xf]
        %v1094 = vld [vmem:[%s1066 + $0x6c] sm:$0xf]
        %v1095 = vld [vmem:[%s1066 + $0x70] sm:$0xf]
        %v1096 = vld [vmem:[%s1066 + $0x74] sm:$0xf]
        %v1097 = vld [vmem:[%s1066 + $0x78] sm:$0xf]
        %v1098 = vld [vmem:[%s1066 + $0x7c] sm:$0xf]
        %v1131 = vunpack.c.l.b16 %v1031
        %v1132 = vunpack.c.h.b16 %v1031
        %v1133 = vunpack.c.l.b16 %v1032
        %v1134 = vunpack.c.h.b16 %v1032
        %v1135 = vunpack.c.l.b16 %v1033
        %v1136 = vunpack.c.h.b16 %v1033
        %v1137 = vunpack.c.l.b16 %v1034
        %v1138 = vunpack.c.h.b16 %v1034
        %v1139 = vunpack.c.l.b16 %v1035
        %v1140 = vunpack.c.h.b16 %v1035
        %v1141 = vunpack.c.l.b16 %v1036
        %v1142 = vunpack.c.h.b16 %v1036
        %v1143 = vunpack.c.l.b16 %v1037
        %v1144 = vunpack.c.h.b16 %v1037
        %v1145 = vunpack.c.l.b16 %v1038
        %v1146 = vunpack.c.h.b16 %v1038
        %v1147 = vunpack.c.l.b16 %v1039
        %v1148 = vunpack.c.h.b16 %v1039
        %v1149 = vunpack.c.l.b16 %v1040
        %v1150 = vunpack.c.h.b16 %v1040
        %v1151 = vunpack.c.l.b16 %v1041
        %v1152 = vunpack.c.h.b16 %v1041
        %v1153 = vunpack.c.l.b16 %v1042
        %v1154 = vunpack.c.h.b16 %v1042
        %v1155 = vunpack.c.l.b16 %v1043
        %v1156 = vunpack.c.h.b16 %v1043
        %v1157 = vunpack.c.l.b16 %v1044
        %v1158 = vunpack.c.h.b16 %v1044
        %v1159 = vunpack.c.l.b16 %v1045
        %v1160 = vunpack.c.h.b16 %v1045
        %v1161 = vunpack.c.l.b16 %v1046
        %v1162 = vunpack.c.h.b16 %v1046
        %v1163 = vunpack.c.l.b16 %v1047
        %v1164 = vunpack.c.h.b16 %v1047
        %v1165 = vunpack.c.l.b16 %v1048
        %v1166 = vunpack.c.h.b16 %v1048
        %v1167 = vunpack.c.l.b16 %v1049
        %v1168 = vunpack.c.h.b16 %v1049
        %v1169 = vunpack.c.l.b16 %v1050
        %v1170 = vunpack.c.h.b16 %v1050
        %v1171 = vunpack.c.l.b16 %v1051
        %v1172 = vunpack.c.h.b16 %v1051
        %v1173 = vunpack.c.l.b16 %v1052
        %v1174 = vunpack.c.h.b16 %v1052
        %v1175 = vunpack.c.l.b16 %v1053
        %v1176 = vunpack.c.h.b16 %v1053
        %v1177 = vunpack.c.l.b16 %v1054
        %v1178 = vunpack.c.h.b16 %v1054
        %v1179 = vunpack.c.l.b16 %v1055
        %v1180 = vunpack.c.h.b16 %v1055
        %v1181 = vunpack.c.l.b16 %v1056
        %v1182 = vunpack.c.h.b16 %v1056
        %v1183 = vunpack.c.l.b16 %v1057
        %v1184 = vunpack.c.h.b16 %v1057
        %v1185 = vunpack.c.l.b16 %v1058
        %v1186 = vunpack.c.h.b16 %v1058
        %v1187 = vunpack.c.l.b16 %v1059
        %v1188 = vunpack.c.h.b16 %v1059
        %v1189 = vunpack.c.l.b16 %v1060
        %v1190 = vunpack.c.h.b16 %v1060
        %v1191 = vunpack.c.l.b16 %v1061
        %v1192 = vunpack.c.h.b16 %v1061
        %v1193 = vunpack.c.l.b16 %v1062
        %v1194 = vunpack.c.h.b16 %v1062
        %v1195 = vpack.c.b16 %v1133, %v1131
        %v1196 = vpack.c.b16 %v1134, %v1132
        %v1197 = vpack.c.b16 %v1137, %v1135
        %v1198 = vpack.c.b16 %v1138, %v1136
        %v1199 = vpack.c.b16 %v1141, %v1139
        %v1200 = vpack.c.b16 %v1142, %v1140
        %v1201 = vpack.c.b16 %v1145, %v1143
        %v1202 = vpack.c.b16 %v1146, %v1144
        %v1203 = vpack.c.b16 %v1149, %v1147
        %v1204 = vpack.c.b16 %v1150, %v1148
        %v1205 = vpack.c.b16 %v1153, %v1151
        %v1206 = vpack.c.b16 %v1154, %v1152
        %v1207 = vpack.c.b16 %v1157, %v1155
        %v1208 = vpack.c.b16 %v1158, %v1156
        %v1209 = vpack.c.b16 %v1161, %v1159
        %v1210 = vpack.c.b16 %v1162, %v1160
        %v1211 = vpack.c.b16 %v1165, %v1163
        %v1212 = vpack.c.b16 %v1166, %v1164
        %v1213 = vpack.c.b16 %v1169, %v1167
        %v1214 = vpack.c.b16 %v1170, %v1168
        %v1215 = vpack.c.b16 %v1173, %v1171
        %v1216 = vpack.c.b16 %v1174, %v1172
        %v1217 = vpack.c.b16 %v1177, %v1175
        %v1218 = vpack.c.b16 %v1178, %v1176
        %v1219 = vpack.c.b16 %v1181, %v1179
        %v1220 = vpack.c.b16 %v1182, %v1180
        %v1221 = vpack.c.b16 %v1185, %v1183
        %v1222 = vpack.c.b16 %v1186, %v1184
        %v1223 = vpack.c.b16 %v1189, %v1187
        %v1224 = vpack.c.b16 %v1190, %v1188
        %v1225 = vpack.c.b16 %v1193, %v1191
        %v1226 = vpack.c.b16 %v1194, %v1192
        %v1291 = vunpack.c.l.b16 %v1067
        %v1292 = vunpack.c.l.b16 %v1068
        %v1293 = vunpack.c.l.b16 %v1069
        %v1294 = vunpack.c.l.b16 %v1070
        %v1295 = vunpack.c.l.b16 %v1071
        %v1296 = vunpack.c.l.b16 %v1072
        %v1297 = vunpack.c.l.b16 %v1073
        %v1298 = vunpack.c.l.b16 %v1074
        %v1299 = vunpack.c.l.b16 %v1075
        %v1300 = vunpack.c.l.b16 %v1076
        %v1301 = vunpack.c.l.b16 %v1077
        %v1302 = vunpack.c.l.b16 %v1078
        %v1303 = vunpack.c.l.b16 %v1079
        %v1304 = vunpack.c.l.b16 %v1080
        %v1305 = vunpack.c.l.b16 %v1081
        %v1306 = vunpack.c.l.b16 %v1082
        %v1307 = vunpack.c.l.b16 %v1083
        %v1308 = vunpack.c.l.b16 %v1084
        %v1309 = vunpack.c.l.b16 %v1085
        %v1310 = vunpack.c.l.b16 %v1086
        %v1311 = vunpack.c.l.b16 %v1087
        %v1312 = vunpack.c.l.b16 %v1088
        %v1313 = vunpack.c.l.b16 %v1089
        %v1314 = vunpack.c.l.b16 %v1090
        %v1315 = vunpack.c.l.b16 %v1091
        %v1316 = vunpack.c.l.b16 %v1092
        %v1317 = vunpack.c.l.b16 %v1093
        %v1318 = vunpack.c.l.b16 %v1094
        %v1319 = vunpack.c.l.b16 %v1095
        %v1320 = vunpack.c.l.b16 %v1096
        %v1321 = vunpack.c.l.b16 %v1097
        %v1322 = vunpack.c.l.b16 %v1098
        %v1323 = vpack.c.b16 %v1292, %v1291
        %v1324 = vpack.c.b16 %v1294, %v1293
        %v1325 = vpack.c.b16 %v1296, %v1295
        %v1326 = vpack.c.b16 %v1298, %v1297
        %v1327 = vpack.c.b16 %v1300, %v1299
        %v1328 = vpack.c.b16 %v1302, %v1301
        %v1329 = vpack.c.b16 %v1304, %v1303
        %v1330 = vpack.c.b16 %v1306, %v1305
        %v1331 = vpack.c.b16 %v1308, %v1307
        %v1332 = vpack.c.b16 %v1310, %v1309
        %v1333 = vpack.c.b16 %v1312, %v1311
        %v1334 = vpack.c.b16 %v1314, %v1313
        %v1335 = vpack.c.b16 %v1316, %v1315
        %v1336 = vpack.c.b16 %v1318, %v1317
        %v1337 = vpack.c.b16 %v1320, %v1319
        %v1338 = vpack.c.b16 %v1322, %v1321
        %1355 = vmatpush.bf16.msra.mxu0 %v1330
        %1356 = vmatpush.bf16.msra.mxu0 %v1329
        %1357 = vmatpush.bf16.msra.mxu0 %v1328
        %1358 = vmatpush.bf16.msra.mxu0 %v1327
        %1359 = vmatpush.bf16.msra.mxu0 %v1326
        %1360 = vmatpush.bf16.msra.mxu0 %v1325
        %1361 = vmatpush.bf16.msra.mxu0 %v1324
        %1362 = vmatpush.bf16.msra.mxu0 %v1323
        %1363 = vmatmul.bf16.gmra.mxu0 %v1195
        %v1364 = vpop.f32.mrf.mxu0
        %v1365 = vadd.f32 0.0, %v1364
        %v1366 = vpop.f32.mrf.mxu0
        %v1367 = vadd.f32 0.0, %v1366
        %1368 = vmatmul.bf16.gmra.mxu0 %v1197
        %v1369 = vpop.f32.mrf.mxu0
        %v1370 = vadd.f32 0.0, %v1369
        %v1371 = vpop.f32.mrf.mxu0
        %v1372 = vadd.f32 0.0, %v1371
        %1373 = vmatmul.bf16.gmra.mxu0 %v1199
        %v1374 = vpop.f32.mrf.mxu0
        %v1375 = vadd.f32 0.0, %v1374
        %v1376 = vpop.f32.mrf.mxu0
        %v1377 = vadd.f32 0.0, %v1376
        %1378 = vmatmul.bf16.gmra.mxu0 %v1201
        %v1379 = vpop.f32.mrf.mxu0
        %v1380 = vadd.f32 0.0, %v1379
        %v1381 = vpop.f32.mrf.mxu0
        %v1382 = vadd.f32 0.0, %v1381
        %1383 = vmatmul.bf16.gmra.mxu0 %v1203
        %v1384 = vpop.f32.mrf.mxu0
        %v1385 = vadd.f32 0.0, %v1384
        %v1386 = vpop.f32.mrf.mxu0
        %v1387 = vadd.f32 0.0, %v1386
        %1388 = vmatmul.bf16.gmra.mxu0 %v1205
        %v1389 = vpop.f32.mrf.mxu0
        %v1390 = vadd.f32 0.0, %v1389
        %v1391 = vpop.f32.mrf.mxu0
        %v1392 = vadd.f32 0.0, %v1391
        %1393 = vmatmul.bf16.gmra.mxu0 %v1207
        %v1394 = vpop.f32.mrf.mxu0
        %v1395 = vadd.f32 0.0, %v1394
        %v1396 = vpop.f32.mrf.mxu0
        %v1397 = vadd.f32 0.0, %v1396
        %1398 = vmatmul.bf16.gmra.mxu0 %v1209
        %v1399 = vpop.f32.mrf.mxu0
        %v1400 = vadd.f32 0.0, %v1399
        %v1401 = vpop.f32.mrf.mxu0
        %v1402 = vadd.f32 0.0, %v1401
        %1403 = vmatmul.bf16.gmra.mxu0 %v1211
        %v1404 = vpop.f32.mrf.mxu0
        %v1405 = vadd.f32 0.0, %v1404
        %v1406 = vpop.f32.mrf.mxu0
        %v1407 = vadd.f32 0.0, %v1406
        %1408 = vmatmul.bf16.gmra.mxu0 %v1213
        %v1409 = vpop.f32.mrf.mxu0
        %v1410 = vadd.f32 0.0, %v1409
        %v1411 = vpop.f32.mrf.mxu0
        %v1412 = vadd.f32 0.0, %v1411
        %1413 = vmatmul.bf16.gmra.mxu0 %v1215
        %v1414 = vpop.f32.mrf.mxu0
        %v1415 = vadd.f32 0.0, %v1414
        %v1416 = vpop.f32.mrf.mxu0
        %v1417 = vadd.f32 0.0, %v1416
        %1418 = vmatmul.bf16.gmra.mxu0 %v1217
        %v1419 = vpop.f32.mrf.mxu0
        %v1420 = vadd.f32 0.0, %v1419
        %v1421 = vpop.f32.mrf.mxu0
        %v1422 = vadd.f32 0.0, %v1421
        %1423 = vmatmul.bf16.gmra.mxu0 %v1219
        %v1424 = vpop.f32.mrf.mxu0
        %v1425 = vadd.f32 0.0, %v1424
        %v1426 = vpop.f32.mrf.mxu0
        %v1427 = vadd.f32 0.0, %v1426
        %1428 = vmatmul.bf16.gmra.mxu0 %v1221
        %v1429 = vpop.f32.mrf.mxu0
        %v1430 = vadd.f32 0.0, %v1429
        %v1431 = vpop.f32.mrf.mxu0
        %v1432 = vadd.f32 0.0, %v1431
        %1433 = vmatmul.bf16.gmra.mxu0 %v1223
        %v1434 = vpop.f32.mrf.mxu0
        %v1435 = vadd.f32 0.0, %v1434
        %v1436 = vpop.f32.mrf.mxu0
        %v1437 = vadd.f32 0.0, %v1436
        %1438 = vmatmul.bf16.gmra.mxu0 %v1225
        %v1439 = vpop.f32.mrf.mxu0
        %v1440 = vadd.f32 0.0, %v1439
        %v1441 = vpop.f32.mrf.mxu0
        %v1442 = vadd.f32 0.0, %v1441
        %1443 = vdwg.mxu0
        %1444 = vmatpush.bf16.msra.mxu0 %v1338
        %1445 = vmatpush.bf16.msra.mxu0 %v1337
        %1446 = vmatpush.bf16.msra.mxu0 %v1336
        %1447 = vmatpush.bf16.msra.mxu0 %v1335
        %1448 = vmatpush.bf16.msra.mxu0 %v1334
        %1449 = vmatpush.bf16.msra.mxu0 %v1333
        %1450 = vmatpush.bf16.msra.mxu0 %v1332
        %1451 = vmatpush.bf16.msra.mxu0 %v1331
        %1452 = vmatmul.bf16.gmra.mxu0 %v1196
        %v1453 = vpop.f32.mrf.mxu0
        %v1454 = vadd.f32 %v1365, %v1453
        %v1455 = vpop.f32.mrf.mxu0
        %v1456 = vadd.f32 %v1367, %v1455
        %1457 = vmatmul.bf16.gmra.mxu0 %v1198
        %v1458 = vpop.f32.mrf.mxu0
        %v1459 = vadd.f32 %v1370, %v1458
        %v1460 = vpop.f32.mrf.mxu0
        %v1461 = vadd.f32 %v1372, %v1460
        %1462 = vmatmul.bf16.gmra.mxu0 %v1200
        %v1463 = vpop.f32.mrf.mxu0
        %v1464 = vadd.f32 %v1375, %v1463
        %v1465 = vpop.f32.mrf.mxu0
        %v1466 = vadd.f32 %v1377, %v1465
        %1467 = vmatmul.bf16.gmra.mxu0 %v1202
        %v1468 = vpop.f32.mrf.mxu0
        %v1469 = vadd.f32 %v1380, %v1468
        %v1470 = vpop.f32.mrf.mxu0
        %v1471 = vadd.f32 %v1382, %v1470
        %1472 = vmatmul.bf16.gmra.mxu0 %v1204
        %v1473 = vpop.f32.mrf.mxu0
        %v1474 = vadd.f32 %v1385, %v1473
        %v1475 = vpop.f32.mrf.mxu0
        %v1476 = vadd.f32 %v1387, %v1475
        %1477 = vmatmul.bf16.gmra.mxu0 %v1206
        %v1478 = vpop.f32.mrf.mxu0
        %v1479 = vadd.f32 %v1390, %v1478
        %v1480 = vpop.f32.mrf.mxu0
        %v1481 = vadd.f32 %v1392, %v1480
        %1482 = vmatmul.bf16.gmra.mxu0 %v1208
        %v1483 = vpop.f32.mrf.mxu0
        %v1484 = vadd.f32 %v1395, %v1483
        %v1485 = vpop.f32.mrf.mxu0
        %v1486 = vadd.f32 %v1397, %v1485
        %1487 = vmatmul.bf16.gmra.mxu0 %v1210
        %v1488 = vpop.f32.mrf.mxu0
        %v1489 = vadd.f32 %v1400, %v1488
        %v1490 = vpop.f32.mrf.mxu0
        %v1491 = vadd.f32 %v1402, %v1490
        %1492 = vmatmul.bf16.gmra.mxu0 %v1212
        %v1493 = vpop.f32.mrf.mxu0
        %v1494 = vadd.f32 %v1405, %v1493
        %v1495 = vpop.f32.mrf.mxu0
        %v1496 = vadd.f32 %v1407, %v1495
        %1497 = vmatmul.bf16.gmra.mxu0 %v1214
        %v1498 = vpop.f32.mrf.mxu0
        %v1499 = vadd.f32 %v1410, %v1498
        %v1500 = vpop.f32.mrf.mxu0
        %v1501 = vadd.f32 %v1412, %v1500
        %1502 = vmatmul.bf16.gmra.mxu0 %v1216
        %v1503 = vpop.f32.mrf.mxu0
        %v1504 = vadd.f32 %v1415, %v1503
        %v1505 = vpop.f32.mrf.mxu0
        %v1506 = vadd.f32 %v1417, %v1505
        %1507 = vmatmul.bf16.gmra.mxu0 %v1218
        %v1508 = vpop.f32.mrf.mxu0
        %v1509 = vadd.f32 %v1420, %v1508
        %v1510 = vpop.f32.mrf.mxu0
        %v1511 = vadd.f32 %v1422, %v1510
        %1512 = vmatmul.bf16.gmra.mxu0 %v1220
        %v1513 = vpop.f32.mrf.mxu0
        %v1514 = vadd.f32 %v1425, %v1513
        %v1515 = vpop.f32.mrf.mxu0
        %v1516 = vadd.f32 %v1427, %v1515
        %1517 = vmatmul.bf16.gmra.mxu0 %v1222
        %v1518 = vpop.f32.mrf.mxu0
        %v1519 = vadd.f32 %v1430, %v1518
        %v1520 = vpop.f32.mrf.mxu0
        %v1521 = vadd.f32 %v1432, %v1520
        %1522 = vmatmul.bf16.gmra.mxu0 %v1224
        %v1523 = vpop.f32.mrf.mxu0
        %v1524 = vadd.f32 %v1435, %v1523
        %v1525 = vpop.f32.mrf.mxu0
        %v1526 = vadd.f32 %v1437, %v1525
        %1527 = vmatmul.bf16.gmra.mxu0 %v1226
        %v1528 = vpop.f32.mrf.mxu0
        %v1529 = vadd.f32 %v1440, %v1528
        %v1530 = vpop.f32.mrf.mxu0
        %v1531 = vadd.f32 %v1442, %v1530
        %1532 = vdwg.mxu0
        %v1533 = vadd.f32 %v999, %v1454
        %v1534 = vadd.f32 %v1000, %v1456
        %v1535 = vadd.f32 %v1001, %v1459
        %v1536 = vadd.f32 %v1002, %v1461
        %v1537 = vadd.f32 %v1003, %v1464
        %v1538 = vadd.f32 %v1004, %v1466
        %v1539 = vadd.f32 %v1005, %v1469
        %v1540 = vadd.f32 %v1006, %v1471
        %v1541 = vadd.f32 %v1007, %v1474
        %v1542 = vadd.f32 %v1008, %v1476
        %v1543 = vadd.f32 %v1009, %v1479
        %v1544 = vadd.f32 %v1010, %v1481
        %v1545 = vadd.f32 %v1011, %v1484
        %v1546 = vadd.f32 %v1012, %v1486
        %v1547 = vadd.f32 %v1013, %v1489
        %v1548 = vadd.f32 %v1014, %v1491
        %v1549 = vadd.f32 %v1015, %v1494
        %v1550 = vadd.f32 %v1016, %v1496
        %v1551 = vadd.f32 %v1017, %v1499
        %v1552 = vadd.f32 %v1018, %v1501
        %v1553 = vadd.f32 %v1019, %v1504
        %v1554 = vadd.f32 %v1020, %v1506
        %v1555 = vadd.f32 %v1021, %v1509
        %v1556 = vadd.f32 %v1022, %v1511
        %v1557 = vadd.f32 %v1023, %v1514
        %v1558 = vadd.f32 %v1024, %v1516
        %v1559 = vadd.f32 %v1025, %v1519
        %v1560 = vadd.f32 %v1026, %v1521
        %v1561 = vadd.f32 %v1027, %v1524
        %v1562 = vadd.f32 %v1028, %v1526
        %v1563 = vadd.f32 %v1029, %v1529
        %v1564 = vadd.f32 %v1030, %v1531
        %1565 = vst [vmem:[#allocation4] sm:$0xff] %v1533
        %1566 = vst [vmem:[#allocation4 + $0x8] sm:$0xff] %v1534
        %1567 = vst [vmem:[#allocation4 + $0x10] sm:$0xff] %v1535
        %1568 = vst [vmem:[#allocation4 + $0x18] sm:$0xff] %v1536
        %1569 = vst [vmem:[#allocation4 + $0x20] sm:$0xff] %v1537
        %1570 = vst [vmem:[#allocation4 + $0x28] sm:$0xff] %v1538
        %1571 = vst [vmem:[#allocation4 + $0x30] sm:$0xff] %v1539
        %1572 = vst [vmem:[#allocation4 + $0x38] sm:$0xff] %v1540
        %1573 = vst [vmem:[#allocation4 + $0x40] sm:$0xff] %v1541
        %1574 = vst [vmem:[#allocation4 + $0x48] sm:$0xff] %v1542
        %1575 = vst [vmem:[#allocation4 + $0x50] sm:$0xff] %v1543
        %1576 = vst [vmem:[#allocation4 + $0x58] sm:$0xff] %v1544
        %1577 = vst [vmem:[#allocation4 + $0x60] sm:$0xff] %v1545
        %1578 = vst [vmem:[#allocation4 + $0x68] sm:$0xff] %v1546
        %1579 = vst [vmem:[#allocation4 + $0x70] sm:$0xff] %v1547
        %1580 = vst [vmem:[#allocation4 + $0x78] sm:$0xff] %v1548
        %1581 = vst [vmem:[#allocation4 + $0x80] sm:$0xff] %v1549
        %1582 = vst [vmem:[#allocation4 + $0x88] sm:$0xff] %v1550
        %1583 = vst [vmem:[#allocation4 + $0x90] sm:$0xff] %v1551
        %1584 = vst [vmem:[#allocation4 + $0x98] sm:$0xff] %v1552
        %1585 = vst [vmem:[#allocation4 + $0xa0] sm:$0xff] %v1553
        %1586 = vst [vmem:[#allocation4 + $0xa8] sm:$0xff] %v1554
        %1587 = vst [vmem:[#allocation4 + $0xb0] sm:$0xff] %v1555
        %1588 = vst [vmem:[#allocation4 + $0xb8] sm:$0xff] %v1556
        %1589 = vst [vmem:[#allocation4 + $0xc0] sm:$0xff] %v1557
        %1590 = vst [vmem:[#allocation4 + $0xc8] sm:$0xff] %v1558
        %1591 = vst [vmem:[#allocation4 + $0xd0] sm:$0xff] %v1559
        %1592 = vst [vmem:[#allocation4 + $0xd8] sm:$0xff] %v1560
        %1593 = vst [vmem:[#allocation4 + $0xe0] sm:$0xff] %v1561
        %1594 = vst [vmem:[#allocation4 + $0xe8] sm:$0xff] %v1562
        %1595 = vst [vmem:[#allocation4 + $0xf0] sm:$0xff] %v1563
        %1596 = vst [vmem:[#allocation4 + $0xf8] sm:$0xff] %v1564
        // Predicated region
        $region89: #{tpu_custom_call.1} parent=51 // pred_check
          %p1597 = pneg %p536
        $region90: #{tpu_custom_call.1} parent=51 // pred_check_branch
          %1599 = sbr.rel (%p1597) target = $region92
        $region91: #{tpu_custom_call.1} parent=51 // pred_region
          %s1600 = smul.u32 %s39, 256
          %s1601 = scalar_lea.vmem [#allocation2], %s1600
          %v1602 = vld [vmem:[%s1601] sm:$0xff]
          %v1603 = vld [vmem:[%s1601 + $0x8] sm:$0xff]
          %v1604 = vld [vmem:[%s1601 + $0x10] sm:$0xff]
          %v1605 = vld [vmem:[%s1601 + $0x18] sm:$0xff]
          %v1606 = vld [vmem:[%s1601 + $0x20] sm:$0xff]
          %v1607 = vld [vmem:[%s1601 + $0x28] sm:$0xff]
          %v1608 = vld [vmem:[%s1601 + $0x30] sm:$0xff]
          %v1609 = vld [vmem:[%s1601 + $0x38] sm:$0xff]
          %v1610 = vld [vmem:[%s1601 + $0x40] sm:$0xff]
          %v1611 = vld [vmem:[%s1601 + $0x48] sm:$0xff]
          %v1612 = vld [vmem:[%s1601 + $0x50] sm:$0xff]
          %v1613 = vld [vmem:[%s1601 + $0x58] sm:$0xff]
          %v1614 = vld [vmem:[%s1601 + $0x60] sm:$0xff]
          %v1615 = vld [vmem:[%s1601 + $0x68] sm:$0xff]
          %v1616 = vld [vmem:[%s1601 + $0x70] sm:$0xff]
          %v1617 = vld [vmem:[%s1601 + $0x78] sm:$0xff]
          %v1618 = vld [vmem:[%s1601 + $0x80] sm:$0xff]
          %v1619 = vld [vmem:[%s1601 + $0x88] sm:$0xff]
          %v1620 = vld [vmem:[%s1601 + $0x90] sm:$0xff]
          %v1621 = vld [vmem:[%s1601 + $0x98] sm:$0xff]
          %v1622 = vld [vmem:[%s1601 + $0xa0] sm:$0xff]
          %v1623 = vld [vmem:[%s1601 + $0xa8] sm:$0xff]
          %v1624 = vld [vmem:[%s1601 + $0xb0] sm:$0xff]
          %v1625 = vld [vmem:[%s1601 + $0xb8] sm:$0xff]
          %v1626 = vld [vmem:[%s1601 + $0xc0] sm:$0xff]
          %v1627 = vld [vmem:[%s1601 + $0xc8] sm:$0xff]
          %v1628 = vld [vmem:[%s1601 + $0xd0] sm:$0xff]
          %v1629 = vld [vmem:[%s1601 + $0xd8] sm:$0xff]
          %v1630 = vld [vmem:[%s1601 + $0xe0] sm:$0xff]
          %v1631 = vld [vmem:[%s1601 + $0xe8] sm:$0xff]
          %v1632 = vld [vmem:[%s1601 + $0xf0] sm:$0xff]
          %v1633 = vld [vmem:[%s1601 + $0xf8] sm:$0xff]
          %v1634 = vld [vmem:[%s467] sm:$0xff]
          %v1635 = vld [vmem:[%s467 + $0x8] sm:$0xff]
          %v1636 = vld [vmem:[%s467 + $0x10] sm:$0xff]
          %v1637 = vld [vmem:[%s467 + $0x18] sm:$0xff]
          %v1638 = vld [vmem:[%s467 + $0x20] sm:$0xff]
          %v1639 = vld [vmem:[%s467 + $0x28] sm:$0xff]
          %v1640 = vld [vmem:[%s467 + $0x30] sm:$0xff]
          %v1641 = vld [vmem:[%s467 + $0x38] sm:$0xff]
          %v1642 = vld [vmem:[%s467 + $0x40] sm:$0xff]
          %v1643 = vld [vmem:[%s467 + $0x48] sm:$0xff]
          %v1644 = vld [vmem:[%s467 + $0x50] sm:$0xff]
          %v1645 = vld [vmem:[%s467 + $0x58] sm:$0xff]
          %v1646 = vld [vmem:[%s467 + $0x60] sm:$0xff]
          %v1647 = vld [vmem:[%s467 + $0x68] sm:$0xff]
          %v1648 = vld [vmem:[%s467 + $0x70] sm:$0xff]
          %v1649 = vld [vmem:[%s467 + $0x78] sm:$0xff]
          %v1650 = vld [vmem:[#allocation4] sm:$0xff]
          %v1651 = vld [vmem:[#allocation4 + $0x8] sm:$0xff]
          %v1652 = vld [vmem:[#allocation4 + $0x10] sm:$0xff]
          %v1653 = vld [vmem:[#allocation4 + $0x18] sm:$0xff]
          %v1654 = vld [vmem:[#allocation4 + $0x20] sm:$0xff]
          %v1655 = vld [vmem:[#allocation4 + $0x28] sm:$0xff]
          %v1656 = vld [vmem:[#allocation4 + $0x30] sm:$0xff]
          %v1657 = vld [vmem:[#allocation4 + $0x38] sm:$0xff]
          %v1658 = vld [vmem:[#allocation4 + $0x40] sm:$0xff]
          %v1659 = vld [vmem:[#allocation4 + $0x48] sm:$0xff]
          %v1660 = vld [vmem:[#allocation4 + $0x50] sm:$0xff]
          %v1661 = vld [vmem:[#allocation4 + $0x58] sm:$0xff]
          %v1662 = vld [vmem:[#allocation4 + $0x60] sm:$0xff]
          %v1663 = vld [vmem:[#allocation4 + $0x68] sm:$0xff]
          %v1664 = vld [vmem:[#allocation4 + $0x70] sm:$0xff]
          %v1665 = vld [vmem:[#allocation4 + $0x78] sm:$0xff]
          %v1666 = vld [vmem:[#allocation4 + $0x80] sm:$0xff]
          %v1667 = vld [vmem:[#allocation4 + $0x88] sm:$0xff]
          %v1668 = vld [vmem:[#allocation4 + $0x90] sm:$0xff]
          %v1669 = vld [vmem:[#allocation4 + $0x98] sm:$0xff]
          %v1670 = vld [vmem:[#allocation4 + $0xa0] sm:$0xff]
          %v1671 = vld [vmem:[#allocation4 + $0xa8] sm:$0xff]
          %v1672 = vld [vmem:[#allocation4 + $0xb0] sm:$0xff]
          %v1673 = vld [vmem:[#allocation4 + $0xb8] sm:$0xff]
          %v1674 = vld [vmem:[#allocation4 + $0xc0] sm:$0xff]
          %v1675 = vld [vmem:[#allocation4 + $0xc8] sm:$0xff]
          %v1676 = vld [vmem:[#allocation4 + $0xd0] sm:$0xff]
          %v1677 = vld [vmem:[#allocation4 + $0xd8] sm:$0xff]
          %v1678 = vld [vmem:[#allocation4 + $0xe0] sm:$0xff]
          %v1679 = vld [vmem:[#allocation4 + $0xe8] sm:$0xff]
          %v1680 = vld [vmem:[#allocation4 + $0xf0] sm:$0xff]
          %v1681 = vld [vmem:[#allocation4 + $0xf8] sm:$0xff]
          %1682 = vmatpush.msra.mxu0 %v1649
          %1683 = vmatpush.msra.mxu0 %v1648
          %1684 = vmatpush.msra.mxu0 %v1647
          %1685 = vmatpush.msra.mxu0 %v1646
          %1686 = vmatpush.msra.mxu0 %v1645
          %1687 = vmatpush.msra.mxu0 %v1644
          %1688 = vmatpush.msra.mxu0 %v1643
          %1689 = vmatpush.msra.mxu0 %v1642
          %1690 = vmatpush.msra.mxu0 %v1641
          %1691 = vmatpush.msra.mxu0 %v1640
          %1692 = vmatpush.msra.mxu0 %v1639
          %1693 = vmatpush.msra.mxu0 %v1638
          %1694 = vmatpush.msra.mxu0 %v1637
          %1695 = vmatpush.msra.mxu0 %v1636
          %1696 = vmatpush.msra.mxu0 %v1635
          %1697 = vmatpush.msra.mxu0 %v1634
          %1698 = vmatmul.f32.gmra.mxu0 %v1602
          %v1699 = vpop.f32.mrf.mxu0
          %v1700 = vadd.f32 %v1650, %v1699
          %1701 = vmatmul.f32.gmra.mxu0 %v1603
          %v1702 = vpop.f32.mrf.mxu0
          %v1703 = vadd.f32 %v1651, %v1702
          %1704 = vmatmul.f32.gmra.mxu0 %v1604
          %v1705 = vpop.f32.mrf.mxu0
          %v1706 = vadd.f32 %v1652, %v1705
          %1707 = vmatmul.f32.gmra.mxu0 %v1605
          %v1708 = vpop.f32.mrf.mxu0
          %v1709 = vadd.f32 %v1653, %v1708
          %1710 = vmatmul.f32.gmra.mxu0 %v1606
          %v1711 = vpop.f32.mrf.mxu0
          %v1712 = vadd.f32 %v1654, %v1711
          %1713 = vmatmul.f32.gmra.mxu0 %v1607
          %v1714 = vpop.f32.mrf.mxu0
          %v1715 = vadd.f32 %v1655, %v1714
          %1716 = vmatmul.f32.gmra.mxu0 %v1608
          %v1717 = vpop.f32.mrf.mxu0
          %v1718 = vadd.f32 %v1656, %v1717
          %1719 = vmatmul.f32.gmra.mxu0 %v1609
          %v1720 = vpop.f32.mrf.mxu0
          %v1721 = vadd.f32 %v1657, %v1720
          %1722 = vmatmul.f32.gmra.mxu0 %v1610
          %v1723 = vpop.f32.mrf.mxu0
          %v1724 = vadd.f32 %v1658, %v1723
          %1725 = vmatmul.f32.gmra.mxu0 %v1611
          %v1726 = vpop.f32.mrf.mxu0
          %v1727 = vadd.f32 %v1659, %v1726
          %1728 = vmatmul.f32.gmra.mxu0 %v1612
          %v1729 = vpop.f32.mrf.mxu0
          %v1730 = vadd.f32 %v1660, %v1729
          %1731 = vmatmul.f32.gmra.mxu0 %v1613
          %v1732 = vpop.f32.mrf.mxu0
          %v1733 = vadd.f32 %v1661, %v1732
          %1734 = vmatmul.f32.gmra.mxu0 %v1614
          %v1735 = vpop.f32.mrf.mxu0
          %v1736 = vadd.f32 %v1662, %v1735
          %1737 = vmatmul.f32.gmra.mxu0 %v1615
          %v1738 = vpop.f32.mrf.mxu0
          %v1739 = vadd.f32 %v1663, %v1738
          %1740 = vmatmul.f32.gmra.mxu0 %v1616
          %v1741 = vpop.f32.mrf.mxu0
          %v1742 = vadd.f32 %v1664, %v1741
          %1743 = vmatmul.f32.gmra.mxu0 %v1617
          %v1744 = vpop.f32.mrf.mxu0
          %v1745 = vadd.f32 %v1665, %v1744
          %1746 = vmatmul.f32.gmra.mxu0 %v1618
          %v1747 = vpop.f32.mrf.mxu0
          %v1748 = vadd.f32 %v1666, %v1747
          %1749 = vmatmul.f32.gmra.mxu0 %v1619
          %v1750 = vpop.f32.mrf.mxu0
          %v1751 = vadd.f32 %v1667, %v1750
          %1752 = vmatmul.f32.gmra.mxu0 %v1620
          %v1753 = vpop.f32.mrf.mxu0
          %v1754 = vadd.f32 %v1668, %v1753
          %1755 = vmatmul.f32.gmra.mxu0 %v1621
          %v1756 = vpop.f32.mrf.mxu0
          %v1757 = vadd.f32 %v1669, %v1756
          %1758 = vmatmul.f32.gmra.mxu0 %v1622
          %v1759 = vpop.f32.mrf.mxu0
          %v1760 = vadd.f32 %v1670, %v1759
          %1761 = vmatmul.f32.gmra.mxu0 %v1623
          %v1762 = vpop.f32.mrf.mxu0
          %v1763 = vadd.f32 %v1671, %v1762
          %1764 = vmatmul.f32.gmra.mxu0 %v1624
          %v1765 = vpop.f32.mrf.mxu0
          %v1766 = vadd.f32 %v1672, %v1765
          %1767 = vmatmul.f32.gmra.mxu0 %v1625
          %v1768 = vpop.f32.mrf.mxu0
          %v1769 = vadd.f32 %v1673, %v1768
          %1770 = vmatmul.f32.gmra.mxu0 %v1626
          %v1771 = vpop.f32.mrf.mxu0
          %v1772 = vadd.f32 %v1674, %v1771
          %1773 = vmatmul.f32.gmra.mxu0 %v1627
          %v1774 = vpop.f32.mrf.mxu0
          %v1775 = vadd.f32 %v1675, %v1774
          %1776 = vmatmul.f32.gmra.mxu0 %v1628
          %v1777 = vpop.f32.mrf.mxu0
          %v1778 = vadd.f32 %v1676, %v1777
          %1779 = vmatmul.f32.gmra.mxu0 %v1629
          %v1780 = vpop.f32.mrf.mxu0
          %v1781 = vadd.f32 %v1677, %v1780
          %1782 = vmatmul.f32.gmra.mxu0 %v1630
          %v1783 = vpop.f32.mrf.mxu0
          %v1784 = vadd.f32 %v1678, %v1783
          %1785 = vmatmul.f32.gmra.mxu0 %v1631
          %v1786 = vpop.f32.mrf.mxu0
          %v1787 = vadd.f32 %v1679, %v1786
          %1788 = vmatmul.f32.gmra.mxu0 %v1632
          %v1789 = vpop.f32.mrf.mxu0
          %v1790 = vadd.f32 %v1680, %v1789
          %1791 = vmatmul.f32.gmra.mxu0 %v1633
          %v1792 = vpop.f32.mrf.mxu0
          %v1793 = vadd.f32 %v1681, %v1792
          %1794 = vdwg.mxu0
          %v1795 = vld [vmem:[%s525] sm:$0x1]
          %v1797 = vperm.slane %v1795, 0
          %v1799 = vadd.f32 %v1700, %v1797
          %v1800 = vadd.f32 %v1703, %v1797
          %v1801 = vadd.f32 %v1706, %v1797
          %v1802 = vadd.f32 %v1709, %v1797
          %v1803 = vadd.f32 %v1712, %v1797
          %v1804 = vadd.f32 %v1715, %v1797
          %v1805 = vadd.f32 %v1718, %v1797
          %v1806 = vadd.f32 %v1721, %v1797
          %v1807 = vadd.f32 %v1724, %v1797
          %v1808 = vadd.f32 %v1727, %v1797
          %v1809 = vadd.f32 %v1730, %v1797
          %v1810 = vadd.f32 %v1733, %v1797
          %v1811 = vadd.f32 %v1736, %v1797
          %v1812 = vadd.f32 %v1739, %v1797
          %v1813 = vadd.f32 %v1742, %v1797
          %v1814 = vadd.f32 %v1745, %v1797
          %v1815 = vadd.f32 %v1748, %v1797
          %v1816 = vadd.f32 %v1751, %v1797
          %v1817 = vadd.f32 %v1754, %v1797
          %v1818 = vadd.f32 %v1757, %v1797
          %v1819 = vadd.f32 %v1760, %v1797
          %v1820 = vadd.f32 %v1763, %v1797
          %v1821 = vadd.f32 %v1766, %v1797
          %v1822 = vadd.f32 %v1769, %v1797
          %v1823 = vadd.f32 %v1772, %v1797
          %v1824 = vadd.f32 %v1775, %v1797
          %v1825 = vadd.f32 %v1778, %v1797
          %v1826 = vadd.f32 %v1781, %v1797
          %v1827 = vadd.f32 %v1784, %v1797
          %v1828 = vadd.f32 %v1787, %v1797
          %v1829 = vadd.f32 %v1790, %v1797
          %v1830 = vadd.f32 %v1793, %v1797
          %v1831 = vtanh.pop %v1799
          %v1832 = vtanh.pop %v1800
          %v1833 = vtanh.pop %v1801
          %v1834 = vtanh.pop %v1802
          %v1835 = vtanh.pop %v1803
          %v1836 = vtanh.pop %v1804
          %v1837 = vtanh.pop %v1805
          %v1838 = vtanh.pop %v1806
          %v1839 = vtanh.pop %v1807
          %v1840 = vtanh.pop %v1808
          %v1841 = vtanh.pop %v1809
          %v1842 = vtanh.pop %v1810
          %v1843 = vtanh.pop %v1811
          %v1844 = vtanh.pop %v1812
          %v1845 = vtanh.pop %v1813
          %v1846 = vtanh.pop %v1814
          %v1847 = vtanh.pop %v1815
          %v1848 = vtanh.pop %v1816
          %v1849 = vtanh.pop %v1817
          %v1850 = vtanh.pop %v1818
          %v1851 = vtanh.pop %v1819
          %v1852 = vtanh.pop %v1820
          %v1853 = vtanh.pop %v1821
          %v1854 = vtanh.pop %v1822
          %v1855 = vtanh.pop %v1823
          %v1856 = vtanh.pop %v1824
          %v1857 = vtanh.pop %v1825
          %v1858 = vtanh.pop %v1826
          %v1859 = vtanh.pop %v1827
          %v1860 = vtanh.pop %v1828
          %v1861 = vtanh.pop %v1829
          %v1862 = vtanh.pop %v1830
          %v1863 = vmul.f32 %v1831, 0.1
          %v1864 = vmul.f32 %v1832, 0.1
          %v1865 = vmul.f32 %v1833, 0.1
          %v1866 = vmul.f32 %v1834, 0.1
          %v1867 = vmul.f32 %v1835, 0.1
          %v1868 = vmul.f32 %v1836, 0.1
          %v1869 = vmul.f32 %v1837, 0.1
          %v1870 = vmul.f32 %v1838, 0.1
          %v1871 = vmul.f32 %v1839, 0.1
          %v1872 = vmul.f32 %v1840, 0.1
          %v1873 = vmul.f32 %v1841, 0.1
          %v1874 = vmul.f32 %v1842, 0.1
          %v1875 = vmul.f32 %v1843, 0.1
          %v1876 = vmul.f32 %v1844, 0.1
          %v1877 = vmul.f32 %v1845, 0.1
          %v1878 = vmul.f32 %v1846, 0.1
          %v1879 = vmul.f32 %v1847, 0.1
          %v1880 = vmul.f32 %v1848, 0.1
          %v1881 = vmul.f32 %v1849, 0.1
          %v1882 = vmul.f32 %v1850, 0.1
          %v1883 = vmul.f32 %v1851, 0.1
          %v1884 = vmul.f32 %v1852, 0.1
          %v1885 = vmul.f32 %v1853, 0.1
          %v1886 = vmul.f32 %v1854, 0.1
          %v1887 = vmul.f32 %v1855, 0.1
          %v1888 = vmul.f32 %v1856, 0.1
          %v1889 = vmul.f32 %v1857, 0.1
          %v1890 = vmul.f32 %v1858, 0.1
          %v1891 = vmul.f32 %v1859, 0.1
          %v1892 = vmul.f32 %v1860, 0.1
          %v1893 = vmul.f32 %v1861, 0.1
          %v1894 = vmul.f32 %v1862, 0.1
          %v1895 = vadd.f32 %v1602, %v1863
          %v1896 = vadd.f32 %v1603, %v1864
          %v1897 = vadd.f32 %v1604, %v1865
          %v1898 = vadd.f32 %v1605, %v1866
          %v1899 = vadd.f32 %v1606, %v1867
          %v1900 = vadd.f32 %v1607, %v1868
          %v1901 = vadd.f32 %v1608, %v1869
          %v1902 = vadd.f32 %v1609, %v1870
          %v1903 = vadd.f32 %v1610, %v1871
          %v1904 = vadd.f32 %v1611, %v1872
          %v1905 = vadd.f32 %v1612, %v1873
          %v1906 = vadd.f32 %v1613, %v1874
          %v1907 = vadd.f32 %v1614, %v1875
          %v1908 = vadd.f32 %v1615, %v1876
          %v1909 = vadd.f32 %v1616, %v1877
          %v1910 = vadd.f32 %v1617, %v1878
          %v1911 = vadd.f32 %v1618, %v1879
          %v1912 = vadd.f32 %v1619, %v1880
          %v1913 = vadd.f32 %v1620, %v1881
          %v1914 = vadd.f32 %v1621, %v1882
          %v1915 = vadd.f32 %v1622, %v1883
          %v1916 = vadd.f32 %v1623, %v1884
          %v1917 = vadd.f32 %v1624, %v1885
          %v1918 = vadd.f32 %v1625, %v1886
          %v1919 = vadd.f32 %v1626, %v1887
          %v1920 = vadd.f32 %v1627, %v1888
          %v1921 = vadd.f32 %v1628, %v1889
          %v1922 = vadd.f32 %v1629, %v1890
          %v1923 = vadd.f32 %v1630, %v1891
          %v1924 = vadd.f32 %v1631, %v1892
          %v1925 = vadd.f32 %v1632, %v1893
          %v1926 = vadd.f32 %v1633, %v1894
          %1927 = vst [vmem:[%s1601] sm:$0xff] %v1895
          %1928 = vst [vmem:[%s1601 + $0x8] sm:$0xff] %v1896
          %1929 = vst [vmem:[%s1601 + $0x10] sm:$0xff] %v1897
          %1930 = vst [vmem:[%s1601 + $0x18] sm:$0xff] %v1898
          %1931 = vst [vmem:[%s1601 + $0x20] sm:$0xff] %v1899
          %1932 = vst [vmem:[%s1601 + $0x28] sm:$0xff] %v1900
          %1933 = vst [vmem:[%s1601 + $0x30] sm:$0xff] %v1901
          %1934 = vst [vmem:[%s1601 + $0x38] sm:$0xff] %v1902
          %1935 = vst [vmem:[%s1601 + $0x40] sm:$0xff] %v1903
          %1936 = vst [vmem:[%s1601 + $0x48] sm:$0xff] %v1904
          %1937 = vst [vmem:[%s1601 + $0x50] sm:$0xff] %v1905
          %1938 = vst [vmem:[%s1601 + $0x58] sm:$0xff] %v1906
          %1939 = vst [vmem:[%s1601 + $0x60] sm:$0xff] %v1907
          %1940 = vst [vmem:[%s1601 + $0x68] sm:$0xff] %v1908
          %1941 = vst [vmem:[%s1601 + $0x70] sm:$0xff] %v1909
          %1942 = vst [vmem:[%s1601 + $0x78] sm:$0xff] %v1910
          %1943 = vst [vmem:[%s1601 + $0x80] sm:$0xff] %v1911
          %1944 = vst [vmem:[%s1601 + $0x88] sm:$0xff] %v1912
          %1945 = vst [vmem:[%s1601 + $0x90] sm:$0xff] %v1913
          %1946 = vst [vmem:[%s1601 + $0x98] sm:$0xff] %v1914
          %1947 = vst [vmem:[%s1601 + $0xa0] sm:$0xff] %v1915
          %1948 = vst [vmem:[%s1601 + $0xa8] sm:$0xff] %v1916
          %1949 = vst [vmem:[%s1601 + $0xb0] sm:$0xff] %v1917
          %1950 = vst [vmem:[%s1601 + $0xb8] sm:$0xff] %v1918
          %1951 = vst [vmem:[%s1601 + $0xc0] sm:$0xff] %v1919
          %1952 = vst [vmem:[%s1601 + $0xc8] sm:$0xff] %v1920
          %1953 = vst [vmem:[%s1601 + $0xd0] sm:$0xff] %v1921
          %1954 = vst [vmem:[%s1601 + $0xd8] sm:$0xff] %v1922
          %1955 = vst [vmem:[%s1601 + $0xe0] sm:$0xff] %v1923
          %1956 = vst [vmem:[%s1601 + $0xe8] sm:$0xff] %v1924
          %1957 = vst [vmem:[%s1601 + $0xf0] sm:$0xff] %v1925
          %1958 = vst [vmem:[%s1601 + $0xf8] sm:$0xff] %v1926
          %p1959 = scmp.eq.s32.totalorder %s38, 1
          // Predicated region
          $region93: #{tpu_custom_call.1} parent=91 // pred_check
            %p1960 = pneg %p1959
          $region94: #{tpu_custom_call.1} parent=91 // pred_check_branch
            %1962 = sbr.rel (%p1960) target = $region96
          $region95: #{tpu_custom_call.1} parent=91 // pred_region
            %1963 = vst [vmem:[%s513] sm:$0xff] %v1895
            %1964 = vst [vmem:[%s513 + $0x8] sm:$0xff] %v1896
            %1965 = vst [vmem:[%s513 + $0x10] sm:$0xff] %v1897
            %1966 = vst [vmem:[%s513 + $0x18] sm:$0xff] %v1898
            %1967 = vst [vmem:[%s513 + $0x20] sm:$0xff] %v1899
            %1968 = vst [vmem:[%s513 + $0x28] sm:$0xff] %v1900
            %1969 = vst [vmem:[%s513 + $0x30] sm:$0xff] %v1901
            %1970 = vst [vmem:[%s513 + $0x38] sm:$0xff] %v1902
            %1971 = vst [vmem:[%s513 + $0x40] sm:$0xff] %v1903
            %1972 = vst [vmem:[%s513 + $0x48] sm:$0xff] %v1904
            %1973 = vst [vmem:[%s513 + $0x50] sm:$0xff] %v1905
            %1974 = vst [vmem:[%s513 + $0x58] sm:$0xff] %v1906
            %1975 = vst [vmem:[%s513 + $0x60] sm:$0xff] %v1907
            %1976 = vst [vmem:[%s513 + $0x68] sm:$0xff] %v1908
            %1977 = vst [vmem:[%s513 + $0x70] sm:$0xff] %v1909
            %1978 = vst [vmem:[%s513 + $0x78] sm:$0xff] %v1910
            %1979 = vst [vmem:[%s513 + $0x80] sm:$0xff] %v1911
            %1980 = vst [vmem:[%s513 + $0x88] sm:$0xff] %v1912
            %1981 = vst [vmem:[%s513 + $0x90] sm:$0xff] %v1913
            %1982 = vst [vmem:[%s513 + $0x98] sm:$0xff] %v1914
            %1983 = vst [vmem:[%s513 + $0xa0] sm:$0xff] %v1915
            %1984 = vst [vmem:[%s513 + $0xa8] sm:$0xff] %v1916
            %1985 = vst [vmem:[%s513 + $0xb0] sm:$0xff] %v1917
            %1986 = vst [vmem:[%s513 + $0xb8] sm:$0xff] %v1918
            %1987 = vst [vmem:[%s513 + $0xc0] sm:$0xff] %v1919
            %1988 = vst [vmem:[%s513 + $0xc8] sm:$0xff] %v1920
            %1989 = vst [vmem:[%s513 + $0xd0] sm:$0xff] %v1921
            %1990 = vst [vmem:[%s513 + $0xd8] sm:$0xff] %v1922
            %1991 = vst [vmem:[%s513 + $0xe0] sm:$0xff] %v1923
            %1992 = vst [vmem:[%s513 + $0xe8] sm:$0xff] %v1924
            %1993 = vst [vmem:[%s513 + $0xf0] sm:$0xff] %v1925
            %1994 = vst [vmem:[%s513 + $0xf8] sm:$0xff] %v1926
            %v1995 = vld [vmem:[#allocation14] sm:$0xff]
            %v1996 = vld [vmem:[#allocation14 + $0x8] sm:$0xff]
            %v1997 = vld [vmem:[#allocation14 + $0x10] sm:$0xff]
            %v1998 = vld [vmem:[#allocation14 + $0x18] sm:$0xff]
            %v1999 = vld [vmem:[#allocation14 + $0x20] sm:$0xff]
            %v2000 = vld [vmem:[#allocation14 + $0x28] sm:$0xff]
            %v2001 = vld [vmem:[#allocation14 + $0x30] sm:$0xff]
            %v2002 = vld [vmem:[#allocation14 + $0x38] sm:$0xff]
            %v2003 = vld [vmem:[#allocation14 + $0x40] sm:$0xff]
            %v2004 = vld [vmem:[#allocation14 + $0x48] sm:$0xff]
            %v2005 = vld [vmem:[#allocation14 + $0x50] sm:$0xff]
            %v2006 = vld [vmem:[#allocation14 + $0x58] sm:$0xff]
            %v2007 = vld [vmem:[#allocation14 + $0x60] sm:$0xff]
            %v2008 = vld [vmem:[#allocation14 + $0x68] sm:$0xff]
            %v2009 = vld [vmem:[#allocation14 + $0x70] sm:$0xff]
            %v2010 = vld [vmem:[#allocation14 + $0x78] sm:$0xff]
            %v2011 = vld [vmem:[%s7] sm:$0x1]
            %v2013 = vperm.slane %v2011, 0
            %2015 = vmatpush.msra.mxu0 %v2010
            %2016 = vmatpush.msra.mxu0 %v2009
            %2017 = vmatpush.msra.mxu0 %v2008
            %2018 = vmatpush.msra.mxu0 %v2007
            %2019 = vmatpush.msra.mxu0 %v2006
            %2020 = vmatpush.msra.mxu0 %v2005
            %2021 = vmatpush.msra.mxu0 %v2004
            %2022 = vmatpush.msra.mxu0 %v2003
            %2023 = vmatpush.msra.mxu0 %v2002
            %2024 = vmatpush.msra.mxu0 %v2001
            %2025 = vmatpush.msra.mxu0 %v2000
            %2026 = vmatpush.msra.mxu0 %v1999
            %2027 = vmatpush.msra.mxu0 %v1998
            %2028 = vmatpush.msra.mxu0 %v1997
            %2029 = vmatpush.msra.mxu0 %v1996
            %2030 = vmatpush.msra.mxu0 %v1995
            %2031 = vmatmul.f32.gmra.mxu0 %v1895
            %v2032 = vpop.f32.mrf.mxu0
            %v2033 = vadd.f32 %v2013, %v2032
            %2034 = vmatmul.f32.gmra.mxu0 %v1896
            %v2035 = vpop.f32.mrf.mxu0
            %v2036 = vadd.f32 %v2013, %v2035
            %2037 = vmatmul.f32.gmra.mxu0 %v1897
            %v2038 = vpop.f32.mrf.mxu0
            %v2039 = vadd.f32 %v2013, %v2038
            %2040 = vmatmul.f32.gmra.mxu0 %v1898
            %v2041 = vpop.f32.mrf.mxu0
            %v2042 = vadd.f32 %v2013, %v2041
            %2043 = vmatmul.f32.gmra.mxu0 %v1899
            %v2044 = vpop.f32.mrf.mxu0
            %v2045 = vadd.f32 %v2013, %v2044
            %2046 = vmatmul.f32.gmra.mxu0 %v1900
            %v2047 = vpop.f32.mrf.mxu0
            %v2048 = vadd.f32 %v2013, %v2047
            %2049 = vmatmul.f32.gmra.mxu0 %v1901
            %v2050 = vpop.f32.mrf.mxu0
            %v2051 = vadd.f32 %v2013, %v2050
            %2052 = vmatmul.f32.gmra.mxu0 %v1902
            %v2053 = vpop.f32.mrf.mxu0
            %v2054 = vadd.f32 %v2013, %v2053
            %2055 = vmatmul.f32.gmra.mxu0 %v1903
            %v2056 = vpop.f32.mrf.mxu0
            %v2057 = vadd.f32 %v2013, %v2056
            %2058 = vmatmul.f32.gmra.mxu0 %v1904
            %v2059 = vpop.f32.mrf.mxu0
            %v2060 = vadd.f32 %v2013, %v2059
            %2061 = vmatmul.f32.gmra.mxu0 %v1905
            %v2062 = vpop.f32.mrf.mxu0
            %v2063 = vadd.f32 %v2013, %v2062
            %2064 = vmatmul.f32.gmra.mxu0 %v1906
            %v2065 = vpop.f32.mrf.mxu0
            %v2066 = vadd.f32 %v2013, %v2065
            %2067 = vmatmul.f32.gmra.mxu0 %v1907
            %v2068 = vpop.f32.mrf.mxu0
            %v2069 = vadd.f32 %v2013, %v2068
            %2070 = vmatmul.f32.gmra.mxu0 %v1908
            %v2071 = vpop.f32.mrf.mxu0
            %v2072 = vadd.f32 %v2013, %v2071
            %2073 = vmatmul.f32.gmra.mxu0 %v1909
            %v2074 = vpop.f32.mrf.mxu0
            %v2075 = vadd.f32 %v2013, %v2074
            %2076 = vmatmul.f32.gmra.mxu0 %v1910
            %v2077 = vpop.f32.mrf.mxu0
            %v2078 = vadd.f32 %v2013, %v2077
            %2079 = vmatmul.f32.gmra.mxu0 %v1911
            %v2080 = vpop.f32.mrf.mxu0
            %v2081 = vadd.f32 %v2013, %v2080
            %2082 = vmatmul.f32.gmra.mxu0 %v1912
            %v2083 = vpop.f32.mrf.mxu0
            %v2084 = vadd.f32 %v2013, %v2083
            %2085 = vmatmul.f32.gmra.mxu0 %v1913
            %v2086 = vpop.f32.mrf.mxu0
            %v2087 = vadd.f32 %v2013, %v2086
            %2088 = vmatmul.f32.gmra.mxu0 %v1914
            %v2089 = vpop.f32.mrf.mxu0
            %v2090 = vadd.f32 %v2013, %v2089
            %2091 = vmatmul.f32.gmra.mxu0 %v1915
            %v2092 = vpop.f32.mrf.mxu0
            %v2093 = vadd.f32 %v2013, %v2092
            %2094 = vmatmul.f32.gmra.mxu0 %v1916
            %v2095 = vpop.f32.mrf.mxu0
            %v2096 = vadd.f32 %v2013, %v2095
            %2097 = vmatmul.f32.gmra.mxu0 %v1917
            %v2098 = vpop.f32.mrf.mxu0
            %v2099 = vadd.f32 %v2013, %v2098
            %2100 = vmatmul.f32.gmra.mxu0 %v1918
            %v2101 = vpop.f32.mrf.mxu0
            %v2102 = vadd.f32 %v2013, %v2101
            %2103 = vmatmul.f32.gmra.mxu0 %v1919
            %v2104 = vpop.f32.mrf.mxu0
            %v2105 = vadd.f32 %v2013, %v2104
            %2106 = vmatmul.f32.gmra.mxu0 %v1920
            %v2107 = vpop.f32.mrf.mxu0
            %v2108 = vadd.f32 %v2013, %v2107
            %2109 = vmatmul.f32.gmra.mxu0 %v1921
            %v2110 = vpop.f32.mrf.mxu0
            %v2111 = vadd.f32 %v2013, %v2110
            %2112 = vmatmul.f32.gmra.mxu0 %v1922
            %v2113 = vpop.f32.mrf.mxu0
            %v2114 = vadd.f32 %v2013, %v2113
            %2115 = vmatmul.f32.gmra.mxu0 %v1923
            %v2116 = vpop.f32.mrf.mxu0
            %v2117 = vadd.f32 %v2013, %v2116
            %2118 = vmatmul.f32.gmra.mxu0 %v1924
            %v2119 = vpop.f32.mrf.mxu0
            %v2120 = vadd.f32 %v2013, %v2119
            %2121 = vmatmul.f32.gmra.mxu0 %v1925
            %v2122 = vpop.f32.mrf.mxu0
            %v2123 = vadd.f32 %v2013, %v2122
            %2124 = vmatmul.f32.gmra.mxu0 %v1926
            %v2125 = vpop.f32.mrf.mxu0
            %v2126 = vadd.f32 %v2013, %v2125
            %2127 = vdwg.mxu0
            %2128 = vst [vmem:[%s520] sm:$0xff] %v2033
            %2129 = vst [vmem:[%s520 + $0x8] sm:$0xff] %v2036
            %2130 = vst [vmem:[%s520 + $0x10] sm:$0xff] %v2039
            %2131 = vst [vmem:[%s520 + $0x18] sm:$0xff] %v2042
            %2132 = vst [vmem:[%s520 + $0x20] sm:$0xff] %v2045
            %2133 = vst [vmem:[%s520 + $0x28] sm:$0xff] %v2048
            %2134 = vst [vmem:[%s520 + $0x30] sm:$0xff] %v2051
            %2135 = vst [vmem:[%s520 + $0x38] sm:$0xff] %v2054
            %2136 = vst [vmem:[%s520 + $0x40] sm:$0xff] %v2057
            %2137 = vst [vmem:[%s520 + $0x48] sm:$0xff] %v2060
            %2138 = vst [vmem:[%s520 + $0x50] sm:$0xff] %v2063
            %2139 = vst [vmem:[%s520 + $0x58] sm:$0xff] %v2066
            %2140 = vst [vmem:[%s520 + $0x60] sm:$0xff] %v2069
            %2141 = vst [vmem:[%s520 + $0x68] sm:$0xff] %v2072
            %2142 = vst [vmem:[%s520 + $0x70] sm:$0xff] %v2075
            %2143 = vst [vmem:[%s520 + $0x78] sm:$0xff] %v2078
            %2144 = vst [vmem:[%s520 + $0x80] sm:$0xff] %v2081
            %2145 = vst [vmem:[%s520 + $0x88] sm:$0xff] %v2084
            %2146 = vst [vmem:[%s520 + $0x90] sm:$0xff] %v2087
            %2147 = vst [vmem:[%s520 + $0x98] sm:$0xff] %v2090
            %2148 = vst [vmem:[%s520 + $0xa0] sm:$0xff] %v2093
            %2149 = vst [vmem:[%s520 + $0xa8] sm:$0xff] %v2096
            %2150 = vst [vmem:[%s520 + $0xb0] sm:$0xff] %v2099
            %2151 = vst [vmem:[%s520 + $0xb8] sm:$0xff] %v2102
            %2152 = vst [vmem:[%s520 + $0xc0] sm:$0xff] %v2105
            %2153 = vst [vmem:[%s520 + $0xc8] sm:$0xff] %v2108
            %2154 = vst [vmem:[%s520 + $0xd0] sm:$0xff] %v2111
            %2155 = vst [vmem:[%s520 + $0xd8] sm:$0xff] %v2114
            %2156 = vst [vmem:[%s520 + $0xe0] sm:$0xff] %v2117
            %2157 = vst [vmem:[%s520 + $0xe8] sm:$0xff] %v2120
            %2158 = vst [vmem:[%s520 + $0xf0] sm:$0xff] %v2123
            %2159 = vst [vmem:[%s520 + $0xf8] sm:$0xff] %v2126
          $region96: #{tpu_custom_call.1} parent=91 // pred_fallthru
            _
        $region92: #{tpu_custom_call.1} parent=51 // pred_fallthru
          _
        %s2160 = sand.u32 %s254, 1
        %s2161 = scalar_lea.sflag [#allocation7], %s2160
        %s2162 = sand.u32 %s254, 1
        %s2163 = smul.addr %s2162, 256
        %s2164 = scalar_lea.vmem [#allocation16], %s2163
        %s2165 = sand.u32 %s284, 1
        %s2166 = scalar_lea.sflag [#allocation18], %s2165
        %s2167 = sand.u32 %s284, 1
        %s2168 = smul.addr %s2167, 256
        %s2169 = scalar_lea.vmem [#allocation17], %s2168
        // Predicated region
        $region97: #{tpu_custom_call.1} parent=51 // pred_check
          %p2170 = pneg %p264
        $region98: #{tpu_custom_call.1} parent=51 // pred_check_branch
          %2172 = sbr.rel (%p2170) target = $region100
        $region99: #{tpu_custom_call.1} parent=51 // pred_region
          %p2173 = scmp.eq.s32.totalorder %s38, 1
          %s2174 = scalar_select %p2173, %s39, 0
          %s2175 = smul.u32 32, %s2174
          %2177 = vsyncadd %s2161, 0
          %s2178 = smul.addr %s2175, 8
          %s2179 = scalar_lea.hbm %s8, %s2178
          %s2180 = sshll.u32 %s2164, 4
          %s2181 = int_to_ptr.vmem [resolvable:$true] %s2180
          %s2182 = sshll.u32 %s2179, 4
          %s2183 = int_to_ptr.hbm [resolvable:$true] %s2182
          %2188 = dma.vmem_to_hbm [thread:$0]  %s2181, 4096, %s2183, %s2161, 128, 128, 8
        $region100: #{tpu_custom_call.1} parent=51 // pred_fallthru
          _
        // Predicated region
        $region101: #{tpu_custom_call.1} parent=51 // pred_check
          %p2189 = pneg %p294
        $region102: #{tpu_custom_call.1} parent=51 // pred_check_branch
          %2191 = sbr.rel (%p2189) target = $region104
        $region103: #{tpu_custom_call.1} parent=51 // pred_region
          %p2192 = scmp.eq.s32.totalorder %s38, 1
          %s2193 = scalar_select %p2192, %s39, 0
          %s2194 = smul.u32 32, %s2193
          %2196 = vsyncadd %s2166, 0
          %s2197 = smul.addr %s2194, 8
          %s2198 = scalar_lea.hbm %s9, %s2197
          %s2199 = sshll.u32 %s2169, 4
          %s2200 = int_to_ptr.vmem [resolvable:$true] %s2199
          %s2201 = sshll.u32 %s2198, 4
          %s2202 = int_to_ptr.hbm [resolvable:$true] %s2201
          %2207 = dma.vmem_to_hbm [thread:$0]  %s2200, 4096, %s2202, %s2166, 128, 128, 8
        $region104: #{tpu_custom_call.1} parent=51 // pred_fallthru
          _
      $region52: #{tpu_custom_call.1} parent=5 // pred_fallthru
        _
      %p2208 = scmp.le.s32.totalorder 2, %s28
      // Predicated region
      $region105: #{tpu_custom_call.1} parent=5 // pred_check
        %p2209 = pneg %p2208
      $region106: #{tpu_custom_call.1} parent=5 // pred_check_branch
        %2211 = sbr.rel (%p2209) target = $region108
      $region107: #{tpu_custom_call.1} parent=5 // pred_region
        %s2212 = ssub.s32 %s28, 2
        // Predicated region
        $region109: #{tpu_custom_call.1} parent=107 // pred_check
          %p2213 = pneg %p270
        $region110: #{tpu_custom_call.1} parent=107 // pred_check_branch
          %2215 = sbr.rel (%p2213) target = $region112
        $region111: #{tpu_custom_call.1} parent=107 // pred_region
          %s2216 = sand.u32 %s255, 1
          %s2217 = scalar_lea.sflag [#allocation7], %s2216
          %s2218 = sand.u32 %s255, 1
          %s2219 = smul.addr %s2218, 256
          %s2220 = scalar_lea.vmem [#allocation16], %s2219
          %2222 = dma.done %s2217, 4096
        $region112: #{tpu_custom_call.1} parent=107 // pred_fallthru
          _
        // Predicated region
        $region113: #{tpu_custom_call.1} parent=107 // pred_check
          %p2223 = pneg %p300
        $region114: #{tpu_custom_call.1} parent=107 // pred_check_branch
          %2225 = sbr.rel (%p2223) target = $region116
        $region115: #{tpu_custom_call.1} parent=107 // pred_region
          %s2226 = sand.u32 %s285, 1
          %s2227 = scalar_lea.sflag [#allocation18], %s2226
          %s2228 = sand.u32 %s285, 1
          %s2229 = smul.addr %s2228, 256
          %s2230 = scalar_lea.vmem [#allocation17], %s2229
          %2232 = dma.done %s2227, 4096
        $region116: #{tpu_custom_call.1} parent=107 // pred_fallthru
          _
      $region108: #{tpu_custom_call.1} parent=5 // pred_fallthru
        _
    $region6: #{tpu_custom_call.1} parent=1 // loop_footer
      %s32 = sadd.s32 1, %s28
    $region7: #{tpu_custom_call.1} parent=1 // loop_footer_branch
      %27 = sbr.rel target = $region3
    $region8: #{tpu_custom_call.1} parent=1 // loop_exit
      _
    %2233 = vsyncpa [#allocation6], 1
    %s2234 = scalar_lea.sflag [#allocation6], 1
    %2235 = vsyncpa %s2234, 1
    %2236 = vsyncpa [#allocation9], 1
    %2237 = vsyncpa [#allocation12], 1
    %s2238 = scalar_lea.sflag [#allocation12], 1
    %2239 = vsyncpa %s2238, 1
    %2240 = vsyncpa [#allocation15], 1
    %2241 = vsyncpa [#allocation7], 1
    %s2242 = scalar_lea.sflag [#allocation7], 1
    %2243 = vsyncpa %s2242, 1
    %2244 = vsyncpa [#allocation18], 1
    %s2245 = scalar_lea.sflag [#allocation18], 1
    %2246 = vsyncpa %s2245, 1

</llo_original>
